<compile_context>
chip_gen: v5e
topology: v5e:2x2
jax: 0.10.0
libtpu: 0.0.40
codegen_flags: <defaults>
</compile_context>

<pallas_src>
import jax
import jax.numpy as jnp
import numpy as np
from jax.experimental import pallas as pl
from jax.experimental.pallas import tpu as pltpu


# ----------------------------------------------------------------------------
# Pallas kernel: full DecoderBlock forward for one batch element.
# ----------------------------------------------------------------------------
def _decoder_block_kernel(x_ref, y_ref,
                          wq_ref, wk_ref, wv_ref, wfc_ref, bfc_ref,
                          w1_ref, b1_ref, w2_ref, b2_ref,
                          o_ref,
                          cat_scr, o1_scr):
    y3 = y_ref[0]                          # (H, S, D) bf16
    x3 = x_ref[0]                          # (H, S, D) bf16
    H, S, D = y3.shape
    E = H * D
    cdt = y3.dtype

    wq_t = wq_ref[...]                     # (D, D) bf16, (in,out), 1/sqrt(E) folded
    wk_t = wk_ref[...]                     # (D, D)
    wv_t = wv_ref[...]                     # (D, D)
    wfc_t = wfc_ref[...]                   # (E, E) bf16, (in,out)
    bfc = bfc_ref[...]                     # (1, E) f32

    def project(a3, w_t):
        # Shared per-head weight applied to all heads/rows as ONE flattened
        # 2-D MXU matmul (minimal 2*S*E*D FLOPs, single RHS push), f32 acc,
        # one bf16 cast of the result.
        p = jnp.dot(a3.reshape(H * S, D), w_t,
                    preferred_element_type=jnp.float32)
        return p.reshape(H, S, D).astype(cdt)

    def attention(v3_in, k3_in, q3_in):
        # values/keys/query: head-major (H, S, D) bf16 -> fc_out(...) (S, E) f32
        q = project(q3_in, wq_t)           # softmax scale already in wq_t
        k = project(k3_in, wk_t)
        v = project(v3_in, wv_t)
        energy = jnp.einsum('hqd,hkd->hqk', q, k,
                            preferred_element_type=jnp.float32)
        energy = energy - jnp.max(energy, axis=-1, keepdims=True)
        p = jnp.exp(energy)                                       # f32, EUP
        inv_den = pl.reciprocal(jnp.sum(p, axis=-1, keepdims=True), approx=True)
        attn = (p * inv_den).astype(cdt)                          # (H, S, S)
        head_out = jnp.einsum('hqk,hkd->hqd', attn, v,
                              preferred_element_type=jnp.float32).astype(cdt)
        # Concat heads into the lane-dense (S, E) scratch (H tiny static
        # lane-slice copies), then fc_out is ONE (S,E)x(E,E) contraction:
        # the sum over heads happens in the MXU f32 accumulator.
        for h in range(H):
            cat_scr[:, h * D:(h + 1) * D] = head_out[h]
        return jnp.dot(cat_scr[...], wfc_t,
                       preferred_element_type=jnp.float32) + bfc  # (S, E) f32

    # ---- attention #1: attention(values=y, keys=y, query=y) ----------------
    fc1 = attention(y3, y3, y3)

    # residual (+ y) fused with the one unavoidable (S,E)->(H,S,D) relayout
    # needed for the pass-2 projections (per-head softmax needs head-major q/v).
    for h in range(H):
        o1_scr[h] = (fc1[:, h * D:(h + 1) * D]
                     + y3[h].astype(jnp.float32)).astype(cdt)
    o1 = o1_scr[...]                        # (H, S, D) bf16

    # ---- attention #2: attention(values=out1, keys=x, query=out1) ----------
    fc2 = attention(o1, x3, o1)             # (S, E) f32, no second residual

    # ---- feed-forward: Linear -> ReLU -> Linear -> ReLU (lane-dense) -------
    h1 = jnp.maximum(
        jnp.dot(fc2.astype(cdt), w1_ref[...],
                preferred_element_type=jnp.float32) + b1_ref[...], 0.0)
    h2 = jnp.maximum(
        jnp.dot(h1.astype(cdt), w2_ref[...],
                preferred_element_type=jnp.float32) + b2_ref[...], 0.0)
    o_ref[0] = h2.astype(o_ref.dtype)       # bf16, E on lanes


# ----------------------------------------------------------------------------
# Wrapper
# ----------------------------------------------------------------------------
def decoder_block_forward(x, y, params, *, n_heads,
                          compute_dtype=jnp.bfloat16):
    B, S, E = x.shape
    assert E % n_heads == 0
    D = E // n_heads
    FE = params["w1"].shape[0]              # forward_dim * E
    cd = compute_dtype

    # Head-major views of the two inputs (free relayout in XLA on HBM); the
    # per-head QK^T inherently needs this layout.  Everything the kernel can
    # keep lane-dense stays (S, E).
    def split_heads(a):                     # (B,S,E) -> (B,H,S,D)
        return a.reshape(B, S, n_heads, D).transpose(0, 2, 1, 3).astype(cd)

    x_h = split_heads(x)
    y_h = split_heads(y)

    inv_scale = 1.0 / (float(E) ** 0.5)
    wq_t = (params["wq"].T * inv_scale).astype(cd)    # (D,D) scale folded into q
    wk_t = params["wk"].T.astype(cd)                  # (D,D)
    wv_t = params["wv"].T.astype(cd)                  # (D,D)
    wfc_t = params["wfc"].T.astype(cd)                # (E,E)
    bfc = params["bfc"].reshape(1, E).astype(jnp.float32)
    w1_t = params["w1"].T.astype(cd)                  # (E, FE)
    b1 = params["b1"].reshape(1, FE).astype(jnp.float32)
    w2_t = params["w2"].T.astype(cd)                  # (FE, E)
    b2 = params["b2"].reshape(1, E).astype(jnp.float32)
    weights = (wq_t, wk_t, wv_t, wfc_t, bfc, w1_t, b1, w2_t, b2)

    def full_spec(a):                       # whole-array block, constant index
        nd = a.ndim
        return pl.BlockSpec(a.shape, lambda b, _nd=nd: (0,) * _nd)

    # VMEM budget derived from the real footprint and the chip's capacity
    # (<= 3/4 of physical VMEM so v7x keeps headroom); never hard-coded.
    nbytes = lambda a: int(a.size) * a.dtype.itemsize
    window_bytes = (2 * n_heads * S * D * 2            # x, y blocks (bf16)
                    + S * E * 2                        # out block (bf16)
                    + sum(nbytes(w) for w in weights)  # resident weights
                    + S * E * 2 + n_heads * S * D * 2) # scratches
    try:
        vmem_cap = int(pltpu.get_tpu_info().vmem_capacity_bytes)
    except Exception:
        vmem_cap = 128 * 1024 * 1024
    vmem_limit = int(min(3 * vmem_cap // 4,
                         max(32 * 1024 * 1024, 8 * window_bytes)))

    flops = B * (12 * S * E * D + 8 * S * S * E + 4 * S * E * E
                 + 4 * S * E * FE)
    transcendentals = 2 * B * n_heads * S * S
    bytes_accessed = (2 * B * S * E * 2 + B * S * E * 2
                      + sum(nbytes(w) for w in weights))

    grid_spec = pltpu.PrefetchScalarGridSpec(
        num_scalar_prefetch=0,
        grid=(B,),                                   # parallel over batch
        in_specs=[
            pl.BlockSpec((1, n_heads, S, D), lambda b: (b, 0, 0, 0)),   # x
            pl.BlockSpec((1, n_heads, S, D), lambda b: (b, 0, 0, 0)),   # y
            *[full_spec(w) for w in weights],        # constant index -> no refetch
        ],
        out_specs=pl.BlockSpec((1, S, E), lambda b: (b, 0, 0)),
        scratch_shapes=[pltpu.VMEM((S, E), cd),             # head-concat slab
                        pltpu.VMEM((n_heads, S, D), cd)],   # out1 (head-major)
    )

    return pl.pallas_call(
        _decoder_block_kernel,
        out_shape=jax.ShapeDtypeStruct((B, S, E), cd),       # bf16 writeback
        grid_spec=grid_spec,
        compiler_params=pltpu.CompilerParams(
            dimension_semantics=("parallel",),
            vmem_limit_bytes=vmem_limit),
        cost_estimate=pl.CostEstimate(
            flops=flops, transcendentals=transcendentals,
            bytes_accessed=bytes_accessed),
    )(x_h, y_h, *weights)


# ----------------------------------------------------------------------------
# Pure-JAX f32 reference (mirrors the PyTorch module exactly)
# ----------------------------------------------------------------------------
def _self_attention_ref(values, keys, query, p, n_heads, E):
    N, vlen, _ = values.shape
    klen, qlen = keys.shape[1], query.shape[1]
    D = E // n_heads
    v = values.reshape(N, vlen, n_heads, D) @ p["wv"].T
    k = keys.reshape(N, klen, n_heads, D) @ p["wk"].T
    q = query.reshape(N, qlen, n_heads, D) @ p["wq"].T
    energy = jnp.einsum("nqhd,nkhd->nhqk", q, k)
    attn = jax.nn.softmax(energy / (E ** 0.5), axis=3)
    out = jnp.einsum("nhql,nlhd->nqhd", attn, v).reshape(N, qlen, E)
    return out @ p["wfc"].T + p["bfc"]


def _decoder_ref(x, y, p, n_heads):
    E = x.shape[-1]
    out = _self_attention_ref(y, y, y, p, n_heads, E)
    out = out + y
    out = _self_attention_ref(out, x, out, p, n_heads, E)
    out = jnp.maximum(out @ p["w1"].T + p["b1"], 0.0)
    out = jnp.maximum(out @ p["w2"].T + p["b2"], 0.0)
    return out


# ----------------------------------------------------------------------------
if __name__ == "__main__":
    B, S, E = 2, 8, 32
    N_HEADS = 4
    FORWARD_DIM = 4
    D = E // N_HEADS

    key = jax.random.PRNGKey(0)
    ks = jax.random.split(key, 11)
    params = {
        "wq": jax.random.normal(ks[0], (D, D), jnp.float32) * 0.2,
        "wk": jax.random.normal(ks[1], (D, D), jnp.float32) * 0.2,
        "wv": jax.random.normal(ks[2], (D, D), jnp.float32) * 0.2,
        "wfc": jax.random.normal(ks[3], (E, E), jnp.float32) * 0.1,
        "bfc": jax.random.normal(ks[4], (E,), jnp.float32) * 0.1,
        "w1": jax.random.normal(ks[5], (FORWARD_DIM * E, E), jnp.float32) * 0.1,
        "b1": jax.random.normal(ks[6], (FORWARD_DIM * E,), jnp.float32) * 0.1,
        "w2": jax.random.normal(ks[7], (E, FORWARD_DIM * E), jnp.float32) * 0.1,
        "b2": jax.random.normal(ks[8], (E,), jnp.float32) * 0.1,
    }
    x = jax.random.normal(ks[9], (B, S, E), jnp.float32)
    y = jax.random.normal(ks[10], (B, S, E), jnp.float32)

    out = decoder_block_forward(x, y, params, n_heads=N_HEADS)
    out = jax.block_until_ready(out)

    ref = _decoder_ref(x, y, params, N_HEADS)
    # bf16 weights/activations/output with f32 MXU accumulation + approx
    # softmax reciprocal -> loose-ish tolerance (deliberate precision trade).
    np.testing.assert_allclose(np.asarray(out.astype(jnp.float32)),
                               np.asarray(ref), rtol=2e-2, atol=2e-2)
    print("KERNEL_OK")
</pallas_src>

<mosaic_0001>
module attributes {stable_mosaic.version = 11 : i64} {
  func.func @_decoder_block_kernel(%arg0: i32, %arg1: memref<1x4x8x8xbf16, #tpu.memory_space<vmem>>, %arg2: memref<1x4x8x8xbf16, #tpu.memory_space<vmem>>, %arg3: memref<8x8xbf16, #tpu.memory_space<vmem>>, %arg4: memref<8x8xbf16, #tpu.memory_space<vmem>>, %arg5: memref<8x8xbf16, #tpu.memory_space<vmem>>, %arg6: memref<32x32xbf16, #tpu.memory_space<vmem>>, %arg7: memref<1x32xf32, #tpu.memory_space<vmem>>, %arg8: memref<32x128xbf16, #tpu.memory_space<vmem>>, %arg9: memref<1x128xf32, #tpu.memory_space<vmem>>, %arg10: memref<128x32xbf16, #tpu.memory_space<vmem>>, %arg11: memref<1x32xf32, #tpu.memory_space<vmem>>, %arg12: memref<1x8x32xbf16, #tpu.memory_space<vmem>>, %arg13: memref<8x32xbf16, #tpu.memory_space<vmem>>, %arg14: memref<4x8x8xbf16, #tpu.memory_space<vmem>>) attributes {dimension_semantics = [#tpu.dimension_semantics<parallel>], iteration_bounds = array<i64: 2>, scalar_prefetch = 0 : i64, scratch_operands = 2 : i64, tpu.core_type = #tpu.core_type<tc>, window_params = [{transform_indices = @transform_0, window_bounds = array<i64: 1, 4, 8, 8>}, {transform_indices = @transform_1, window_bounds = array<i64: 1, 4, 8, 8>}, {pipeline_mode = #tpu.pipeline_mode<synchronous>, transform_indices = @transform_2, window_bounds = array<i64: 8, 8>}, {pipeline_mode = #tpu.pipeline_mode<synchronous>, transform_indices = @transform_3, window_bounds = array<i64: 8, 8>}, {pipeline_mode = #tpu.pipeline_mode<synchronous>, transform_indices = @transform_4, window_bounds = array<i64: 8, 8>}, {pipeline_mode = #tpu.pipeline_mode<synchronous>, transform_indices = @transform_5, window_bounds = array<i64: 32, 32>}, {pipeline_mode = #tpu.pipeline_mode<synchronous>, transform_indices = @transform_6, window_bounds = array<i64: 1, 32>}, {pipeline_mode = #tpu.pipeline_mode<synchronous>, transform_indices = @transform_7, window_bounds = array<i64: 32, 128>}, {pipeline_mode = #tpu.pipeline_mode<synchronous>, transform_indices = @transform_8, window_bounds = array<i64: 1, 128>}, {pipeline_mode = #tpu.pipeline_mode<synchronous>, transform_indices = @transform_9, window_bounds = array<i64: 128, 32>}, {pipeline_mode = #tpu.pipeline_mode<synchronous>, transform_indices = @transform_10, window_bounds = array<i64: 1, 32>}, {transform_indices = @transform_11, window_bounds = array<i64: 1, 8, 32>}]} {
    %c0 = arith.constant 0 : index
    %c0_0 = arith.constant 0 : index
    %c0_1 = arith.constant 0 : index
    %c0_2 = arith.constant 0 : index
    %0 = vector.load %arg2[%c0, %c0_0, %c0_1, %c0_2] : memref<1x4x8x8xbf16, #tpu.memory_space<vmem>>, vector<1x4x8x8xbf16>
    %1 = vector.shape_cast %0 : vector<1x4x8x8xbf16> to vector<4x8x8xbf16>
    %c0_3 = arith.constant 0 : index
    %c0_4 = arith.constant 0 : index
    %c0_5 = arith.constant 0 : index
    %c0_6 = arith.constant 0 : index
    %2 = vector.load %arg1[%c0_3, %c0_4, %c0_5, %c0_6] : memref<1x4x8x8xbf16, #tpu.memory_space<vmem>>, vector<1x4x8x8xbf16>
    %3 = vector.shape_cast %2 : vector<1x4x8x8xbf16> to vector<4x8x8xbf16>
    %c0_7 = arith.constant 0 : index
    %c0_8 = arith.constant 0 : index
    %4 = vector.load %arg3[%c0_7, %c0_8] : memref<8x8xbf16, #tpu.memory_space<vmem>>, vector<8x8xbf16>
    %c0_9 = arith.constant 0 : index
    %c0_10 = arith.constant 0 : index
    %5 = vector.load %arg4[%c0_9, %c0_10] : memref<8x8xbf16, #tpu.memory_space<vmem>>, vector<8x8xbf16>
    %c0_11 = arith.constant 0 : index
    %c0_12 = arith.constant 0 : index
    %6 = vector.load %arg5[%c0_11, %c0_12] : memref<8x8xbf16, #tpu.memory_space<vmem>>, vector<8x8xbf16>
    %c0_13 = arith.constant 0 : index
    %c0_14 = arith.constant 0 : index
    %7 = vector.load %arg6[%c0_13, %c0_14] : memref<32x32xbf16, #tpu.memory_space<vmem>>, vector<32x32xbf16>
    %c0_15 = arith.constant 0 : index
    %c0_16 = arith.constant 0 : index
    %8 = vector.load %arg7[%c0_15, %c0_16] : memref<1x32xf32, #tpu.memory_space<vmem>>, vector<1x32xf32>
    %9 = vector.shape_cast %1 : vector<4x8x8xbf16> to vector<32x8xbf16>
    %cst = arith.constant dense<0.000000e+00> : vector<32x8xf32>
    %10 = tpu.matmul %9, %4, %cst {dimension_numbers = #tpu.dot_dimension_numbers<[1], [0], [0], [1], [0, 0, 1, 1], [], []>} : vector<32x8xbf16>, vector<8x8xbf16>, vector<32x8xf32> -> vector<32x8xf32>
    %11 = vector.shape_cast %10 : vector<32x8xf32> to vector<4x8x8xf32>
    %12 = arith.truncf %11 : vector<4x8x8xf32> to vector<4x8x8xbf16>
    %13 = vector.shape_cast %1 : vector<4x8x8xbf16> to vector<32x8xbf16>
    %cst_17 = arith.constant dense<0.000000e+00> : vector<32x8xf32>
    %14 = tpu.matmul %13, %5, %cst_17 {dimension_numbers = #tpu.dot_dimension_numbers<[1], [0], [0], [1], [0, 0, 1, 1], [], []>} : vector<32x8xbf16>, vector<8x8xbf16>, vector<32x8xf32> -> vector<32x8xf32>
    %15 = vector.shape_cast %14 : vector<32x8xf32> to vector<4x8x8xf32>
    %16 = arith.truncf %15 : vector<4x8x8xf32> to vector<4x8x8xbf16>
    %17 = vector.shape_cast %1 : vector<4x8x8xbf16> to vector<32x8xbf16>
    %cst_18 = arith.constant dense<0.000000e+00> : vector<32x8xf32>
    %18 = tpu.matmul %17, %6, %cst_18 {dimension_numbers = #tpu.dot_dimension_numbers<[1], [0], [0], [1], [0, 0, 1, 1], [], []>} : vector<32x8xbf16>, vector<8x8xbf16>, vector<32x8xf32> -> vector<32x8xf32>
    %19 = vector.shape_cast %18 : vector<32x8xf32> to vector<4x8x8xf32>
    %20 = arith.truncf %19 : vector<4x8x8xf32> to vector<4x8x8xbf16>
    "tpu.trace_start"() <{level = 10 : i32, message = "hqd,hkd->hqk"}> : () -> ()
    %cst_19 = arith.constant dense<0.000000e+00> : vector<4x8x8xf32>
    %21 = tpu.matmul %12, %16, %cst_19 {dimension_numbers = #tpu.dot_dimension_numbers<[2], [2], [1], [1], [0, 0, 0, 1, 1, 1], [0], [0]>} : vector<4x8x8xbf16>, vector<4x8x8xbf16>, vector<4x8x8xf32> -> vector<4x8x8xf32>
    "tpu.trace_stop"() : () -> ()
    %cst_20 = arith.constant dense<0xFF800000> : vector<4x8xf32>
    %22 = vector.multi_reduction <maximumf>, %21, %cst_20 [2] : vector<4x8x8xf32> to vector<4x8xf32>
    %23 = vector.shape_cast %22 : vector<4x8xf32> to vector<4x8x1xf32>
    %24 = vector.broadcast %23 : vector<4x8x1xf32> to vector<4x8x8xf32>
    %25 = arith.subf %21, %24 : vector<4x8x8xf32>
    %26 = math.exp %25 : vector<4x8x8xf32>
    %cst_21 = arith.constant dense<0.000000e+00> : vector<4x8xf32>
    %27 = vector.multi_reduction <add>, %26, %cst_21 [2] : vector<4x8x8xf32> to vector<4x8xf32>
    %28 = vector.shape_cast %27 : vector<4x8xf32> to vector<4x8x1xf32>
    %29 = tpu.reciprocal %28 {approx = true} : vector<4x8x1xf32> -> vector<4x8x1xf32>
    %30 = vector.broadcast %29 : vector<4x8x1xf32> to vector<4x8x8xf32>
    %31 = arith.mulf %26, %30 : vector<4x8x8xf32>
    %32 = arith.truncf %31 : vector<4x8x8xf32> to vector<4x8x8xbf16>
    "tpu.trace_start"() <{level = 10 : i32, message = "hqk,hkd->hqd"}> : () -> ()
    %cst_22 = arith.constant dense<0.000000e+00> : vector<4x8x8xf32>
    %33 = tpu.matmul %32, %20, %cst_22 {dimension_numbers = #tpu.dot_dimension_numbers<[2], [1], [1], [2], [0, 0, 0, 1, 1, 2], [0], [0]>} : vector<4x8x8xbf16>, vector<4x8x8xbf16>, vector<4x8x8xf32> -> vector<4x8x8xf32>
    "tpu.trace_stop"() : () -> ()
    %34 = arith.truncf %33 : vector<4x8x8xf32> to vector<4x8x8xbf16>
    %35 = vector.extract_strided_slice %34 {offsets = [0, 0, 0], sizes = [1, 8, 8], strides = [1, 1, 1]} : vector<4x8x8xbf16> to vector<1x8x8xbf16>
    %36 = vector.shape_cast %35 : vector<1x8x8xbf16> to vector<8x8xbf16>
    %c0_23 = arith.constant 0 : index
    %c0_24 = arith.constant 0 : index
    %37 = vector.load %arg13[%c0_23, %c0_24] : memref<8x32xbf16, #tpu.memory_space<vmem>>, vector<8x8xbf16>
    tpu.vector_store %arg13[%c0_23, %c0_24], %36 {strides = array<i32>} : memref<8x32xbf16, #tpu.memory_space<vmem>>, vector<8x8xbf16>,
    %38 = vector.extract_strided_slice %34 {offsets = [1, 0, 0], sizes = [1, 8, 8], strides = [1, 1, 1]} : vector<4x8x8xbf16> to vector<1x8x8xbf16>
    %39 = vector.shape_cast %38 : vector<1x8x8xbf16> to vector<8x8xbf16>
    %c0_25 = arith.constant 0 : index
    %c8 = arith.constant 8 : index
    %40 = vector.load %arg13[%c0_25, %c8] : memref<8x32xbf16, #tpu.memory_space<vmem>>, vector<8x8xbf16>
    tpu.vector_store %arg13[%c0_25, %c8], %39 {strides = array<i32>} : memref<8x32xbf16, #tpu.memory_space<vmem>>, vector<8x8xbf16>,
    %41 = vector.extract_strided_slice %34 {offsets = [2, 0, 0], sizes = [1, 8, 8], strides = [1, 1, 1]} : vector<4x8x8xbf16> to vector<1x8x8xbf16>
    %42 = vector.shape_cast %41 : vector<1x8x8xbf16> to vector<8x8xbf16>
    %c0_26 = arith.constant 0 : index
    %c16 = arith.constant 16 : index
    %43 = vector.load %arg13[%c0_26, %c16] : memref<8x32xbf16, #tpu.memory_space<vmem>>, vector<8x8xbf16>
    tpu.vector_store %arg13[%c0_26, %c16], %42 {strides = array<i32>} : memref<8x32xbf16, #tpu.memory_space<vmem>>, vector<8x8xbf16>,
    %44 = vector.extract_strided_slice %34 {offsets = [3, 0, 0], sizes = [1, 8, 8], strides = [1, 1, 1]} : vector<4x8x8xbf16> to vector<1x8x8xbf16>
    %45 = vector.shape_cast %44 : vector<1x8x8xbf16> to vector<8x8xbf16>
    %c0_27 = arith.constant 0 : index
    %c24 = arith.constant 24 : index
    %46 = vector.load %arg13[%c0_27, %c24] : memref<8x32xbf16, #tpu.memory_space<vmem>>, vector<8x8xbf16>
    tpu.vector_store %arg13[%c0_27, %c24], %45 {strides = array<i32>} : memref<8x32xbf16, #tpu.memory_space<vmem>>, vector<8x8xbf16>,
    %c0_28 = arith.constant 0 : index
    %c0_29 = arith.constant 0 : index
    %47 = vector.load %arg13[%c0_28, %c0_29] : memref<8x32xbf16, #tpu.memory_space<vmem>>, vector<8x32xbf16>
    %cst_30 = arith.constant dense<0.000000e+00> : vector<8x32xf32>
    %48 = tpu.matmul %47, %7, %cst_30 {dimension_numbers = #tpu.dot_dimension_numbers<[1], [0], [0], [1], [0, 0, 1, 1], [], []>} : vector<8x32xbf16>, vector<32x32xbf16>, vector<8x32xf32> -> vector<8x32xf32>
    %49 = vector.broadcast %8 : vector<1x32xf32> to vector<8x32xf32>
    %50 = arith.addf %48, %49 : vector<8x32xf32>
    %51 = vector.extract_strided_slice %50 {offsets = [0, 0], sizes = [8, 8], strides = [1, 1]} : vector<8x32xf32> to vector<8x8xf32>
    %52 = vector.extract_strided_slice %1 {offsets = [0, 0, 0], sizes = [1, 8, 8], strides = [1, 1, 1]} : vector<4x8x8xbf16> to vector<1x8x8xbf16>
    %53 = vector.shape_cast %52 : vector<1x8x8xbf16> to vector<8x8xbf16>
    %54 = arith.extf %53 : vector<8x8xbf16> to vector<8x8xf32>
    %55 = arith.addf %51, %54 : vector<8x8xf32>
    %56 = arith.truncf %55 : vector<8x8xf32> to vector<8x8xbf16>
    %c0_31 = arith.constant 0 : index
    %c0_32 = arith.constant 0 : index
    %c0_33 = arith.constant 0 : index
    %57 = vector.load %arg14[%c0_31, %c0_32, %c0_33] : memref<4x8x8xbf16, #tpu.memory_space<vmem>>, vector<1x8x8xbf16>
    %58 = vector.shape_cast %57 : vector<1x8x8xbf16> to vector<8x8xbf16>
    %59 = vector.shape_cast %56 : vector<8x8xbf16> to vector<1x8x8xbf16>
    tpu.vector_store %arg14[%c0_31, %c0_32, %c0_33], %59 {strides = array<i32>} : memref<4x8x8xbf16, #tpu.memory_space<vmem>>, vector<1x8x8xbf16>,
    %60 = vector.extract_strided_slice %50 {offsets = [0, 8], sizes = [8, 8], strides = [1, 1]} : vector<8x32xf32> to vector<8x8xf32>
    %61 = vector.extract_strided_slice %1 {offsets = [1, 0, 0], sizes = [1, 8, 8], strides = [1, 1, 1]} : vector<4x8x8xbf16> to vector<1x8x8xbf16>
    %62 = vector.shape_cast %61 : vector<1x8x8xbf16> to vector<8x8xbf16>
    %63 = arith.extf %62 : vector<8x8xbf16> to vector<8x8xf32>
    %64 = arith.addf %60, %63 : vector<8x8xf32>
    %65 = arith.truncf %64 : vector<8x8xf32> to vector<8x8xbf16>
    %c1 = arith.constant 1 : index
    %c0_34 = arith.constant 0 : index
    %c0_35 = arith.constant 0 : index
    %66 = vector.load %arg14[%c1, %c0_34, %c0_35] : memref<4x8x8xbf16, #tpu.memory_space<vmem>>, vector<1x8x8xbf16>
    %67 = vector.shape_cast %66 : vector<1x8x8xbf16> to vector<8x8xbf16>
    %68 = vector.shape_cast %65 : vector<8x8xbf16> to vector<1x8x8xbf16>
    tpu.vector_store %arg14[%c1, %c0_34, %c0_35], %68 {strides = array<i32>} : memref<4x8x8xbf16, #tpu.memory_space<vmem>>, vector<1x8x8xbf16>,
    %69 = vector.extract_strided_slice %50 {offsets = [0, 16], sizes = [8, 8], strides = [1, 1]} : vector<8x32xf32> to vector<8x8xf32>
    %70 = vector.extract_strided_slice %1 {offsets = [2, 0, 0], sizes = [1, 8, 8], strides = [1, 1, 1]} : vector<4x8x8xbf16> to vector<1x8x8xbf16>
    %71 = vector.shape_cast %70 : vector<1x8x8xbf16> to vector<8x8xbf16>
    %72 = arith.extf %71 : vector<8x8xbf16> to vector<8x8xf32>
    %73 = arith.addf %69, %72 : vector<8x8xf32>
    %74 = arith.truncf %73 : vector<8x8xf32> to vector<8x8xbf16>
    %c2 = arith.constant 2 : index
    %c0_36 = arith.constant 0 : index
    %c0_37 = arith.constant 0 : index
    %75 = vector.load %arg14[%c2, %c0_36, %c0_37] : memref<4x8x8xbf16, #tpu.memory_space<vmem>>, vector<1x8x8xbf16>
    %76 = vector.shape_cast %75 : vector<1x8x8xbf16> to vector<8x8xbf16>
    %77 = vector.shape_cast %74 : vector<8x8xbf16> to vector<1x8x8xbf16>
    tpu.vector_store %arg14[%c2, %c0_36, %c0_37], %77 {strides = array<i32>} : memref<4x8x8xbf16, #tpu.memory_space<vmem>>, vector<1x8x8xbf16>,
    %78 = vector.extract_strided_slice %50 {offsets = [0, 24], sizes = [8, 8], strides = [1, 1]} : vector<8x32xf32> to vector<8x8xf32>
    %79 = vector.extract_strided_slice %1 {offsets = [3, 0, 0], sizes = [1, 8, 8], strides = [1, 1, 1]} : vector<4x8x8xbf16> to vector<1x8x8xbf16>
    %80 = vector.shape_cast %79 : vector<1x8x8xbf16> to vector<8x8xbf16>
    %81 = arith.extf %80 : vector<8x8xbf16> to vector<8x8xf32>
    %82 = arith.addf %78, %81 : vector<8x8xf32>
    %83 = arith.truncf %82 : vector<8x8xf32> to vector<8x8xbf16>
    %c3 = arith.constant 3 : index
    %c0_38 = arith.constant 0 : index
    %c0_39 = arith.constant 0 : index
    %84 = vector.load %arg14[%c3, %c0_38, %c0_39] : memref<4x8x8xbf16, #tpu.memory_space<vmem>>, vector<1x8x8xbf16>
    %85 = vector.shape_cast %84 : vector<1x8x8xbf16> to vector<8x8xbf16>
    %86 = vector.shape_cast %83 : vector<8x8xbf16> to vector<1x8x8xbf16>
    tpu.vector_store %arg14[%c3, %c0_38, %c0_39], %86 {strides = array<i32>} : memref<4x8x8xbf16, #tpu.memory_space<vmem>>, vector<1x8x8xbf16>,
    %c0_40 = arith.constant 0 : index
    %c0_41 = arith.constant 0 : index
    %c0_42 = arith.constant 0 : index
    %87 = vector.load %arg14[%c0_40, %c0_41, %c0_42] : memref<4x8x8xbf16, #tpu.memory_space<vmem>>, vector<4x8x8xbf16>
    %88 = vector.shape_cast %87 : vector<4x8x8xbf16> to vector<32x8xbf16>
    %cst_43 = arith.constant dense<0.000000e+00> : vector<32x8xf32>
    %89 = tpu.matmul %88, %4, %cst_43 {dimension_numbers = #tpu.dot_dimension_numbers<[1], [0], [0], [1], [0, 0, 1, 1], [], []>} : vector<32x8xbf16>, vector<8x8xbf16>, vector<32x8xf32> -> vector<32x8xf32>
    %90 = vector.shape_cast %89 : vector<32x8xf32> to vector<4x8x8xf32>
    %91 = arith.truncf %90 : vector<4x8x8xf32> to vector<4x8x8xbf16>
    %92 = vector.shape_cast %3 : vector<4x8x8xbf16> to vector<32x8xbf16>
    %cst_44 = arith.constant dense<0.000000e+00> : vector<32x8xf32>
    %93 = tpu.matmul %92, %5, %cst_44 {dimension_numbers = #tpu.dot_dimension_numbers<[1], [0], [0], [1], [0, 0, 1, 1], [], []>} : vector<32x8xbf16>, vector<8x8xbf16>, vector<32x8xf32> -> vector<32x8xf32>
    %94 = vector.shape_cast %93 : vector<32x8xf32> to vector<4x8x8xf32>
    %95 = arith.truncf %94 : vector<4x8x8xf32> to vector<4x8x8xbf16>
    %96 = vector.shape_cast %87 : vector<4x8x8xbf16> to vector<32x8xbf16>
    %cst_45 = arith.constant dense<0.000000e+00> : vector<32x8xf32>
    %97 = tpu.matmul %96, %6, %cst_45 {dimension_numbers = #tpu.dot_dimension_numbers<[1], [0], [0], [1], [0, 0, 1, 1], [], []>} : vector<32x8xbf16>, vector<8x8xbf16>, vector<32x8xf32> -> vector<32x8xf32>
    %98 = vector.shape_cast %97 : vector<32x8xf32> to vector<4x8x8xf32>
    %99 = arith.truncf %98 : vector<4x8x8xf32> to vector<4x8x8xbf16>
    "tpu.trace_start"() <{level = 10 : i32, message = "hqd,hkd->hqk"}> : () -> ()
    %cst_46 = arith.constant dense<0.000000e+00> : vector<4x8x8xf32>
    %100 = tpu.matmul %91, %95, %cst_46 {dimension_numbers = #tpu.dot_dimension_numbers<[2], [2], [1], [1], [0, 0, 0, 1, 1, 1], [0], [0]>} : vector<4x8x8xbf16>, vector<4x8x8xbf16>, vector<4x8x8xf32> -> vector<4x8x8xf32>
    "tpu.trace_stop"() : () -> ()
    %cst_47 = arith.constant dense<0xFF800000> : vector<4x8xf32>
    %101 = vector.multi_reduction <maximumf>, %100, %cst_47 [2] : vector<4x8x8xf32> to vector<4x8xf32>
    %102 = vector.shape_cast %101 : vector<4x8xf32> to vector<4x8x1xf32>
    %103 = vector.broadcast %102 : vector<4x8x1xf32> to vector<4x8x8xf32>
    %104 = arith.subf %100, %103 : vector<4x8x8xf32>
    %105 = math.exp %104 : vector<4x8x8xf32>
    %cst_48 = arith.constant dense<0.000000e+00> : vector<4x8xf32>
    %106 = vector.multi_reduction <add>, %105, %cst_48 [2] : vector<4x8x8xf32> to vector<4x8xf32>
    %107 = vector.shape_cast %106 : vector<4x8xf32> to vector<4x8x1xf32>
    %108 = tpu.reciprocal %107 {approx = true} : vector<4x8x1xf32> -> vector<4x8x1xf32>
    %109 = vector.broadcast %108 : vector<4x8x1xf32> to vector<4x8x8xf32>
    %110 = arith.mulf %105, %109 : vector<4x8x8xf32>
    %111 = arith.truncf %110 : vector<4x8x8xf32> to vector<4x8x8xbf16>
    "tpu.trace_start"() <{level = 10 : i32, message = "hqk,hkd->hqd"}> : () -> ()
    %cst_49 = arith.constant dense<0.000000e+00> : vector<4x8x8xf32>
    %112 = tpu.matmul %111, %99, %cst_49 {dimension_numbers = #tpu.dot_dimension_numbers<[2], [1], [1], [2], [0, 0, 0, 1, 1, 2], [0], [0]>} : vector<4x8x8xbf16>, vector<4x8x8xbf16>, vector<4x8x8xf32> -> vector<4x8x8xf32>
    "tpu.trace_stop"() : () -> ()
    %113 = arith.truncf %112 : vector<4x8x8xf32> to vector<4x8x8xbf16>
    %114 = vector.extract_strided_slice %113 {offsets = [0, 0, 0], sizes = [1, 8, 8], strides = [1, 1, 1]} : vector<4x8x8xbf16> to vector<1x8x8xbf16>
    %115 = vector.shape_cast %114 : vector<1x8x8xbf16> to vector<8x8xbf16>
    %c0_50 = arith.constant 0 : index
    %c0_51 = arith.constant 0 : index
    %116 = vector.load %arg13[%c0_50, %c0_51] : memref<8x32xbf16, #tpu.memory_space<vmem>>, vector<8x8xbf16>
    tpu.vector_store %arg13[%c0_50, %c0_51], %115 {strides = array<i32>} : memref<8x32xbf16, #tpu.memory_space<vmem>>, vector<8x8xbf16>,
    %117 = vector.extract_strided_slice %113 {offsets = [1, 0, 0], sizes = [1, 8, 8], strides = [1, 1, 1]} : vector<4x8x8xbf16> to vector<1x8x8xbf16>
    %118 = vector.shape_cast %117 : vector<1x8x8xbf16> to vector<8x8xbf16>
    %c0_52 = arith.constant 0 : index
    %c8_53 = arith.constant 8 : index
    %119 = vector.load %arg13[%c0_52, %c8_53] : memref<8x32xbf16, #tpu.memory_space<vmem>>, vector<8x8xbf16>
    tpu.vector_store %arg13[%c0_52, %c8_53], %118 {strides = array<i32>} : memref<8x32xbf16, #tpu.memory_space<vmem>>, vector<8x8xbf16>,
    %120 = vector.extract_strided_slice %113 {offsets = [2, 0, 0], sizes = [1, 8, 8], strides = [1, 1, 1]} : vector<4x8x8xbf16> to vector<1x8x8xbf16>
    %121 = vector.shape_cast %120 : vector<1x8x8xbf16> to vector<8x8xbf16>
    %c0_54 = arith.constant 0 : index
    %c16_55 = arith.constant 16 : index
    %122 = vector.load %arg13[%c0_54, %c16_55] : memref<8x32xbf16, #tpu.memory_space<vmem>>, vector<8x8xbf16>
    tpu.vector_store %arg13[%c0_54, %c16_55], %121 {strides = array<i32>} : memref<8x32xbf16, #tpu.memory_space<vmem>>, vector<8x8xbf16>,
    %123 = vector.extract_strided_slice %113 {offsets = [3, 0, 0], sizes = [1, 8, 8], strides = [1, 1, 1]} : vector<4x8x8xbf16> to vector<1x8x8xbf16>
    %124 = vector.shape_cast %123 : vector<1x8x8xbf16> to vector<8x8xbf16>
    %c0_56 = arith.constant 0 : index
    %c24_57 = arith.constant 24 : index
    %125 = vector.load %arg13[%c0_56, %c24_57] : memref<8x32xbf16, #tpu.memory_space<vmem>>, vector<8x8xbf16>
    tpu.vector_store %arg13[%c0_56, %c24_57], %124 {strides = array<i32>} : memref<8x32xbf16, #tpu.memory_space<vmem>>, vector<8x8xbf16>,
    %c0_58 = arith.constant 0 : index
    %c0_59 = arith.constant 0 : index
    %126 = vector.load %arg13[%c0_58, %c0_59] : memref<8x32xbf16, #tpu.memory_space<vmem>>, vector<8x32xbf16>
    %cst_60 = arith.constant dense<0.000000e+00> : vector<8x32xf32>
    %127 = tpu.matmul %126, %7, %cst_60 {dimension_numbers = #tpu.dot_dimension_numbers<[1], [0], [0], [1], [0, 0, 1, 1], [], []>} : vector<8x32xbf16>, vector<32x32xbf16>, vector<8x32xf32> -> vector<8x32xf32>
    %128 = vector.broadcast %8 : vector<1x32xf32> to vector<8x32xf32>
    %129 = arith.addf %127, %128 : vector<8x32xf32>
    %130 = arith.truncf %129 : vector<8x32xf32> to vector<8x32xbf16>
    %c0_61 = arith.constant 0 : index
    %c0_62 = arith.constant 0 : index
    %131 = vector.load %arg8[%c0_61, %c0_62] : memref<32x128xbf16, #tpu.memory_space<vmem>>, vector<32x128xbf16>
    %cst_63 = arith.constant dense<0.000000e+00> : vector<8x128xf32>
    %132 = tpu.matmul %130, %131, %cst_63 {dimension_numbers = #tpu.dot_dimension_numbers<[1], [0], [0], [1], [0, 0, 1, 1], [], []>} : vector<8x32xbf16>, vector<32x128xbf16>, vector<8x128xf32> -> vector<8x128xf32>
    %c0_64 = arith.constant 0 : index
    %c0_65 = arith.constant 0 : index
    %133 = vector.load %arg9[%c0_64, %c0_65] : memref<1x128xf32, #tpu.memory_space<vmem>>, vector<1x128xf32>
    %134 = vector.broadcast %133 : vector<1x128xf32> to vector<8x128xf32>
    %135 = arith.addf %132, %134 : vector<8x128xf32>
    %cst_66 = arith.constant 0.000000e+00 : f32
    %136 = vector.broadcast %cst_66 : f32 to vector<8x128xf32>
    %137 = arith.maximumf %135, %136 : vector<8x128xf32>
    %138 = arith.truncf %137 : vector<8x128xf32> to vector<8x128xbf16>
    %c0_67 = arith.constant 0 : index
    %c0_68 = arith.constant 0 : index
    %139 = vector.load %arg10[%c0_67, %c0_68] : memref<128x32xbf16, #tpu.memory_space<vmem>>, vector<128x32xbf16>
    %cst_69 = arith.constant dense<0.000000e+00> : vector<8x32xf32>
    %140 = tpu.matmul %138, %139, %cst_69 {dimension_numbers = #tpu.dot_dimension_numbers<[1], [0], [0], [1], [0, 0, 1, 1], [], []>} : vector<8x128xbf16>, vector<128x32xbf16>, vector<8x32xf32> -> vector<8x32xf32>
    %c0_70 = arith.constant 0 : index
    %c0_71 = arith.constant 0 : index
    %141 = vector.load %arg11[%c0_70, %c0_71] : memref<1x32xf32, #tpu.memory_space<vmem>>, vector<1x32xf32>
    %142 = vector.broadcast %141 : vector<1x32xf32> to vector<8x32xf32>
    %143 = arith.addf %140, %142 : vector<8x32xf32>
    %cst_72 = arith.constant 0.000000e+00 : f32
    %144 = vector.broadcast %cst_72 : f32 to vector<8x32xf32>
    %145 = arith.maximumf %143, %144 : vector<8x32xf32>
    %146 = arith.truncf %145 : vector<8x32xf32> to vector<8x32xbf16>
    %c0_73 = arith.constant 0 : index
    %c0_74 = arith.constant 0 : index
    %c0_75 = arith.constant 0 : index
    %147 = vector.load %arg12[%c0_73, %c0_74, %c0_75] : memref<1x8x32xbf16, #tpu.memory_space<vmem>>, vector<1x8x32xbf16>
    %148 = vector.shape_cast %147 : vector<1x8x32xbf16> to vector<8x32xbf16>
    %149 = vector.shape_cast %146 : vector<8x32xbf16> to vector<1x8x32xbf16>
    tpu.vector_store %arg12[%c0_73, %c0_74, %c0_75], %149 {strides = array<i32>} : memref<1x8x32xbf16, #tpu.memory_space<vmem>>, vector<1x8x32xbf16>,
    return
  }
  func.func @transform_0(%arg0: i32) -> (i32, i32, i32, i32) {
    %c0_i32 = arith.constant 0 : i32
    %c0_i32_0 = arith.constant 0 : i32
    %c0_i32_1 = arith.constant 0 : i32
    %c0_i32_2 = arith.constant 0 : i32
    return %arg0, %c0_i32, %c0_i32_0, %c0_i32_1 : i32, i32, i32, i32
  }
  func.func @transform_1(%arg0: i32) -> (i32, i32, i32, i32) {
    %c0_i32 = arith.constant 0 : i32
    %c0_i32_0 = arith.constant 0 : i32
    %c0_i32_1 = arith.constant 0 : i32
    %c0_i32_2 = arith.constant 0 : i32
    return %arg0, %c0_i32, %c0_i32_0, %c0_i32_1 : i32, i32, i32, i32
  }
  func.func @transform_2(%arg0: i32) -> (i32, i32) {
    %c0_i32 = arith.constant 0 : i32
    %c0_i32_0 = arith.constant 0 : i32
    %c0_i32_1 = arith.constant 0 : i32
    return %c0_i32, %c0_i32_0 : i32, i32
  }
  func.func @transform_3(%arg0: i32) -> (i32, i32) {
    %c0_i32 = arith.constant 0 : i32
    %c0_i32_0 = arith.constant 0 : i32
    %c0_i32_1 = arith.constant 0 : i32
    return %c0_i32, %c0_i32_0 : i32, i32
  }
  func.func @transform_4(%arg0: i32) -> (i32, i32) {
    %c0_i32 = arith.constant 0 : i32
    %c0_i32_0 = arith.constant 0 : i32
    %c0_i32_1 = arith.constant 0 : i32
    return %c0_i32, %c0_i32_0 : i32, i32
  }
  func.func @transform_5(%arg0: i32) -> (i32, i32) {
    %c0_i32 = arith.constant 0 : i32
    %c0_i32_0 = arith.constant 0 : i32
    %c0_i32_1 = arith.constant 0 : i32
    return %c0_i32, %c0_i32_0 : i32, i32
  }
  func.func @transform_6(%arg0: i32) -> (i32, i32) {
    %c0_i32 = arith.constant 0 : i32
    %c0_i32_0 = arith.constant 0 : i32
    %c0_i32_1 = arith.constant 0 : i32
    return %c0_i32, %c0_i32_0 : i32, i32
  }
  func.func @transform_7(%arg0: i32) -> (i32, i32) {
    %c0_i32 = arith.constant 0 : i32
    %c0_i32_0 = arith.constant 0 : i32
    %c0_i32_1 = arith.constant 0 : i32
    return %c0_i32, %c0_i32_0 : i32, i32
  }
  func.func @transform_8(%arg0: i32) -> (i32, i32) {
    %c0_i32 = arith.constant 0 : i32
    %c0_i32_0 = arith.constant 0 : i32
    %c0_i32_1 = arith.constant 0 : i32
    return %c0_i32, %c0_i32_0 : i32, i32
  }
  func.func @transform_9(%arg0: i32) -> (i32, i32) {
    %c0_i32 = arith.constant 0 : i32
    %c0_i32_0 = arith.constant 0 : i32
    %c0_i32_1 = arith.constant 0 : i32
    return %c0_i32, %c0_i32_0 : i32, i32
  }
  func.func @transform_10(%arg0: i32) -> (i32, i32) {
    %c0_i32 = arith.constant 0 : i32
    %c0_i32_0 = arith.constant 0 : i32
    %c0_i32_1 = arith.constant 0 : i32
    return %c0_i32, %c0_i32_0 : i32, i32
  }
  func.func @transform_11(%arg0: i32) -> (i32, i32, i32) {
    %c0_i32 = arith.constant 0 : i32
    %c0_i32_0 = arith.constant 0 : i32
    %c0_i32_1 = arith.constant 0 : i32
    return %arg0, %c0_i32, %c0_i32_0 : i32, i32, i32
  }
}

</mosaic_0001>

<llo_original>
// kernel: tpu_custom_call.1
$region0: #{tpu_custom_call.1}
  #allocation0 [shape = 'u32[]', space=smem, size = 0x4, offset = 0x4, fixed_abs, tag = 'smem constant byte address 0x4 - core index']
  #allocation1 [shape = 'u32[72,128]{1,0:T(1,128)}', space=vmem, size = 0x9000, scoped, tag = 'internal scratch']
  #allocation2 [shape = 'bf16[8,32]{1,0:T(8,128)(2,1)}', space=vmem, size = 0x800, scoped, tag = 'scratch operand']
  #allocation3 [shape = 'bf16[4,8,8]{2,1,0:T(8,128)(2,1)}', space=vmem, size = 0x2000, scoped, tag = 'scratch operand']
  %s0 = inlined_call_operand.vmem [shape: bf16[2,4,8,8], index: 0, kind: input, shape index: {}]
  %s1 = inlined_call_operand.vmem [shape: bf16[2,4,8,8], index: 1, kind: input, shape index: {}]
  %s2 = inlined_call_operand.hbm [shape: bf16[8,8], index: 2, kind: input, shape index: {}]
  %s3 = inlined_call_operand.hbm [shape: bf16[8,8], index: 3, kind: input, shape index: {}]
  %s4 = inlined_call_operand.hbm [shape: bf16[8,8], index: 4, kind: input, shape index: {}]
  %s5 = inlined_call_operand.vmem [shape: bf16[32,32], index: 5, kind: input, shape index: {}]
  %s6 = inlined_call_operand.vmem [shape: f32[1,32], index: 6, kind: input, shape index: {}]
  %s7 = inlined_call_operand.hbm [shape: bf16[32,128], index: 7, kind: input, shape index: {}]
  %s8 = inlined_call_operand.vmem [shape: f32[1,128], index: 8, kind: input, shape index: {}]
  %s9 = inlined_call_operand.vmem [shape: bf16[128,32], index: 9, kind: input, shape index: {}]
  %s10 = inlined_call_operand.vmem [shape: f32[1,32], index: 10, kind: input, shape index: {}]
  %s11 = inlined_call_operand.hbm [shape: bf16[2,8,32], index: 11, kind: output, shape index: {}]
  %s12 = sld [smem:[#allocation0]]
  $region93: #{tpu_custom_call.1} parent=0
    _
  %s14 = ssub.s32 1, %s12
  %s15 = scalar_select 0, %s14, %s12
  $region1: #{tpu_custom_call.1} parent=0
    #allocation4 [shape = 'u8[2048]{0}', space=vmem, size = 0x800, scoped, tag = 'input window, operand 2, single buffered']
    #allocation5 [shape = 's32[2]{0}', space=sflag, size = 0x8, scoped, tag = 'scoped memory for tpu_custom_call.1']
    #allocation6 [shape = 's32[2]{0}', space=sflag, size = 0x8, scoped, tag = 'scoped memory for tpu_custom_call.1']
    #allocation7 [shape = 'u8[2048]{0}', space=vmem, size = 0x800, scoped, tag = 'input window, operand 3, single buffered']
    #allocation8 [shape = 's32[1]{0}', space=sflag, size = 0x4, scoped, tag = 'scoped memory for tpu_custom_call.1']
    #allocation9 [shape = 'u8[2048]{0}', space=vmem, size = 0x800, scoped, tag = 'input window, operand 4, single buffered']
    #allocation10 [shape = 'u8[8192]{0}', space=vmem, size = 0x2000, scoped, tag = 'input window, operand 7, single buffered']
    #allocation11 [shape = 's32[1]{0}', space=sflag, size = 0x4, scoped, tag = 'scoped memory for tpu_custom_call.1']
    #allocation12 [shape = 'u8[4096]{0}', space=vmem, size = 0x1000, scoped, tag = 'output window, operand 0']
    %16 = vsyncpa [#allocation5], 0
    %17 = vsyncpa [#allocation8], 0
    %18 = vsyncpa [#allocation11], 0
    %19 = vsyncpa [#allocation6], 0
    %s20 = scalar_lea.sflag [#allocation6], 1
    %21 = vsyncpa %s20, 0
    loop: start=0, step=1, limit=4
    $region2: #{tpu_custom_call.1} parent=1 // loop_pre_header
      _
    $region3: #{tpu_custom_call.1} parent=1 // loop_header
      %s23 = sphi 0, %s27
      %p24 = scmp.ge.s32.totalorder %s23, 4
      %s33 = sphi 0, %s35
      %s36 = sphi 0, %s33
      %s37 = sphi 0, %s36
      %s53 = sphi 0, %s37
      %s59 = sphi 0, %s61
      %s62 = sphi 0, %s59
      %s63 = sphi 0, %s62
      %s79 = sphi 0, %s63
      %s83 = sphi 0, %s83
      %s85 = sphi 0, %s83
      %s86 = sphi 0, %s85
      %s100 = sphi 0, %s86
      %s104 = sphi 0, %s104
      %s106 = sphi 0, %s104
      %s107 = sphi 0, %s106
      %s121 = sphi 0, %s107
      %s125 = sphi 0, %s125
      %s127 = sphi 0, %s125
      %s128 = sphi 0, %s127
      %s142 = sphi 0, %s128
      %s146 = sphi 0, %s146
      %s148 = sphi 0, %s146
      %s149 = sphi 0, %s148
      %s163 = sphi 0, %s149
      %s167 = sphi 0, %s167
      %s169 = sphi 0, %s167
      %s170 = sphi 0, %s169
      %s184 = sphi 0, %s170
      %s188 = sphi 0, %s188
      %s190 = sphi 0, %s188
      %s191 = sphi 0, %s190
      %s205 = sphi 0, %s191
      %s209 = sphi 0, %s209
      %s211 = sphi 0, %s209
      %s212 = sphi 0, %s211
      %s226 = sphi 0, %s212
      %s230 = sphi 0, %s230
      %s232 = sphi 0, %s230
      %s233 = sphi 0, %s232
      %s247 = sphi 0, %s233
      %s251 = sphi 0, %s251
      %s253 = sphi 0, %s251
      %s254 = sphi 0, %s253
      %s268 = sphi 0, %s254
      %s274 = sphi 0, %s276
      %s277 = sphi 0, %s274
      %s278 = sphi 0, %s277
      %s294 = sphi 0, %s278
    $region4: #{tpu_custom_call.1} parent=1 // loop_header_branch
      %26 = sbr.rel (%p24) target = $region8
    $region5: #{tpu_custom_call.1} parent=1 // loop_body
      %s28 = ssub.s32 %s23, 1
      %s29 = ssub.s32 %s23, 2
      %s30 = sadd.s32 %s23, 1
      %s31 = ssub.s32 %s23, %s30
      %p32 = scmp.eq.s32.totalorder %s31, 0
      %s34 = sadd.s32 %s33, 1
      %s35 = scalar_select %p32, %s33, %s34
      %p38 = pneg %p32
      %p39 = scmp.eq.s32.totalorder %s23, 1
      %p40 = por %p38, %p39
      %p41 = scmp.ne.s32.totalorder %s33, %s36
      %p42 = scmp.eq.s32.totalorder %s23, 0
      %p43 = por %p41, %p42
      %p44 = scmp.ne.s32.totalorder %s33, %s36
      %p45 = scmp.eq.s32.totalorder %s28, 1
      %p46 = por %p44, %p45
      %p47 = scmp.ne.s32.totalorder %s36, %s37
      %p48 = scmp.eq.s32.totalorder %s28, 0
      %p49 = por %p47, %p48
      %p50 = scmp.ne.s32.totalorder %s36, %s37
      %p51 = scmp.eq.s32.totalorder %s29, 1
      %p52 = por %p50, %p51
      %p54 = scmp.ne.s32.totalorder %s37, %s53
      %p55 = scmp.eq.s32.totalorder %s29, 0
      %p56 = por %p54, %p55
      %s57 = ssub.s32 %s23, %s30
      %p58 = scmp.eq.s32.totalorder %s57, 0
      %s60 = sadd.s32 %s59, 1
      %s61 = scalar_select %p58, %s59, %s60
      %p64 = pneg %p58
      %p65 = scmp.eq.s32.totalorder %s23, 1
      %p66 = por %p64, %p65
      %p67 = scmp.ne.s32.totalorder %s59, %s62
      %p68 = scmp.eq.s32.totalorder %s23, 0
      %p69 = por %p67, %p68
      %p70 = scmp.ne.s32.totalorder %s59, %s62
      %p71 = scmp.eq.s32.totalorder %s28, 1
      %p72 = por %p70, %p71
      %p73 = scmp.ne.s32.totalorder %s62, %s63
      %p74 = scmp.eq.s32.totalorder %s28, 0
      %p75 = por %p73, %p74
      %p76 = scmp.ne.s32.totalorder %s62, %s63
      %p77 = scmp.eq.s32.totalorder %s29, 1
      %p78 = por %p76, %p77
      %p80 = scmp.ne.s32.totalorder %s63, %s79
      %p81 = scmp.eq.s32.totalorder %s29, 0
      %p82 = por %p80, %p81
      %s84 = sadd.s32 %s83, 1
      %p87 = scmp.eq.s32.totalorder %s23, 1
      %p88 = scmp.ne.s32.totalorder %s83, %s85
      %p89 = scmp.eq.s32.totalorder %s23, 0
      %p90 = por %p88, %p89
      %p91 = scmp.ne.s32.totalorder %s83, %s85
      %p92 = scmp.eq.s32.totalorder %s28, 1
      %p93 = por %p91, %p92
      %p94 = scmp.ne.s32.totalorder %s85, %s86
      %p95 = scmp.eq.s32.totalorder %s28, 0
      %p96 = por %p94, %p95
      %p97 = scmp.ne.s32.totalorder %s85, %s86
      %p98 = scmp.eq.s32.totalorder %s29, 1
      %p99 = por %p97, %p98
      %p101 = scmp.ne.s32.totalorder %s86, %s100
      %p102 = scmp.eq.s32.totalorder %s29, 0
      %p103 = por %p101, %p102
      %s105 = sadd.s32 %s104, 1
      %p108 = scmp.eq.s32.totalorder %s23, 1
      %p109 = scmp.ne.s32.totalorder %s104, %s106
      %p110 = scmp.eq.s32.totalorder %s23, 0
      %p111 = por %p109, %p110
      %p112 = scmp.ne.s32.totalorder %s104, %s106
      %p113 = scmp.eq.s32.totalorder %s28, 1
      %p114 = por %p112, %p113
      %p115 = scmp.ne.s32.totalorder %s106, %s107
      %p116 = scmp.eq.s32.totalorder %s28, 0
      %p117 = por %p115, %p116
      %p118 = scmp.ne.s32.totalorder %s106, %s107
      %p119 = scmp.eq.s32.totalorder %s29, 1
      %p120 = por %p118, %p119
      %p122 = scmp.ne.s32.totalorder %s107, %s121
      %p123 = scmp.eq.s32.totalorder %s29, 0
      %p124 = por %p122, %p123
      %s126 = sadd.s32 %s125, 1
      %p129 = scmp.eq.s32.totalorder %s23, 1
      %p130 = scmp.ne.s32.totalorder %s125, %s127
      %p131 = scmp.eq.s32.totalorder %s23, 0
      %p132 = por %p130, %p131
      %p133 = scmp.ne.s32.totalorder %s125, %s127
      %p134 = scmp.eq.s32.totalorder %s28, 1
      %p135 = por %p133, %p134
      %p136 = scmp.ne.s32.totalorder %s127, %s128
      %p137 = scmp.eq.s32.totalorder %s28, 0
      %p138 = por %p136, %p137
      %p139 = scmp.ne.s32.totalorder %s127, %s128
      %p140 = scmp.eq.s32.totalorder %s29, 1
      %p141 = por %p139, %p140
      %p143 = scmp.ne.s32.totalorder %s128, %s142
      %p144 = scmp.eq.s32.totalorder %s29, 0
      %p145 = por %p143, %p144
      %s147 = sadd.s32 %s146, 1
      %p150 = scmp.eq.s32.totalorder %s23, 1
      %p151 = scmp.ne.s32.totalorder %s146, %s148
      %p152 = scmp.eq.s32.totalorder %s23, 0
      %p153 = por %p151, %p152
      %p154 = scmp.ne.s32.totalorder %s146, %s148
      %p155 = scmp.eq.s32.totalorder %s28, 1
      %p156 = por %p154, %p155
      %p157 = scmp.ne.s32.totalorder %s148, %s149
      %p158 = scmp.eq.s32.totalorder %s28, 0
      %p159 = por %p157, %p158
      %p160 = scmp.ne.s32.totalorder %s148, %s149
      %p161 = scmp.eq.s32.totalorder %s29, 1
      %p162 = por %p160, %p161
      %p164 = scmp.ne.s32.totalorder %s149, %s163
      %p165 = scmp.eq.s32.totalorder %s29, 0
      %p166 = por %p164, %p165
      %s168 = sadd.s32 %s167, 1
      %p171 = scmp.eq.s32.totalorder %s23, 1
      %p172 = scmp.ne.s32.totalorder %s167, %s169
      %p173 = scmp.eq.s32.totalorder %s23, 0
      %p174 = por %p172, %p173
      %p175 = scmp.ne.s32.totalorder %s167, %s169
      %p176 = scmp.eq.s32.totalorder %s28, 1
      %p177 = por %p175, %p176
      %p178 = scmp.ne.s32.totalorder %s169, %s170
      %p179 = scmp.eq.s32.totalorder %s28, 0
      %p180 = por %p178, %p179
      %p181 = scmp.ne.s32.totalorder %s169, %s170
      %p182 = scmp.eq.s32.totalorder %s29, 1
      %p183 = por %p181, %p182
      %p185 = scmp.ne.s32.totalorder %s170, %s184
      %p186 = scmp.eq.s32.totalorder %s29, 0
      %p187 = por %p185, %p186
      %s189 = sadd.s32 %s188, 1
      %p192 = scmp.eq.s32.totalorder %s23, 1
      %p193 = scmp.ne.s32.totalorder %s188, %s190
      %p194 = scmp.eq.s32.totalorder %s23, 0
      %p195 = por %p193, %p194
      %p196 = scmp.ne.s32.totalorder %s188, %s190
      %p197 = scmp.eq.s32.totalorder %s28, 1
      %p198 = por %p196, %p197
      %p199 = scmp.ne.s32.totalorder %s190, %s191
      %p200 = scmp.eq.s32.totalorder %s28, 0
      %p201 = por %p199, %p200
      %p202 = scmp.ne.s32.totalorder %s190, %s191
      %p203 = scmp.eq.s32.totalorder %s29, 1
      %p204 = por %p202, %p203
      %p206 = scmp.ne.s32.totalorder %s191, %s205
      %p207 = scmp.eq.s32.totalorder %s29, 0
      %p208 = por %p206, %p207
      %s210 = sadd.s32 %s209, 1
      %p213 = scmp.eq.s32.totalorder %s23, 1
      %p214 = scmp.ne.s32.totalorder %s209, %s211
      %p215 = scmp.eq.s32.totalorder %s23, 0
      %p216 = por %p214, %p215
      %p217 = scmp.ne.s32.totalorder %s209, %s211
      %p218 = scmp.eq.s32.totalorder %s28, 1
      %p219 = por %p217, %p218
      %p220 = scmp.ne.s32.totalorder %s211, %s212
      %p221 = scmp.eq.s32.totalorder %s28, 0
      %p222 = por %p220, %p221
      %p223 = scmp.ne.s32.totalorder %s211, %s212
      %p224 = scmp.eq.s32.totalorder %s29, 1
      %p225 = por %p223, %p224
      %p227 = scmp.ne.s32.totalorder %s212, %s226
      %p228 = scmp.eq.s32.totalorder %s29, 0
      %p229 = por %p227, %p228
      %s231 = sadd.s32 %s230, 1
      %p234 = scmp.eq.s32.totalorder %s23, 1
      %p235 = scmp.ne.s32.totalorder %s230, %s232
      %p236 = scmp.eq.s32.totalorder %s23, 0
      %p237 = por %p235, %p236
      %p238 = scmp.ne.s32.totalorder %s230, %s232
      %p239 = scmp.eq.s32.totalorder %s28, 1
      %p240 = por %p238, %p239
      %p241 = scmp.ne.s32.totalorder %s232, %s233
      %p242 = scmp.eq.s32.totalorder %s28, 0
      %p243 = por %p241, %p242
      %p244 = scmp.ne.s32.totalorder %s232, %s233
      %p245 = scmp.eq.s32.totalorder %s29, 1
      %p246 = por %p244, %p245
      %p248 = scmp.ne.s32.totalorder %s233, %s247
      %p249 = scmp.eq.s32.totalorder %s29, 0
      %p250 = por %p248, %p249
      %s252 = sadd.s32 %s251, 1
      %p255 = scmp.eq.s32.totalorder %s23, 1
      %p256 = scmp.ne.s32.totalorder %s251, %s253
      %p257 = scmp.eq.s32.totalorder %s23, 0
      %p258 = por %p256, %p257
      %p259 = scmp.ne.s32.totalorder %s251, %s253
      %p260 = scmp.eq.s32.totalorder %s28, 1
      %p261 = por %p259, %p260
      %p262 = scmp.ne.s32.totalorder %s253, %s254
      %p263 = scmp.eq.s32.totalorder %s28, 0
      %p264 = por %p262, %p263
      %p265 = scmp.ne.s32.totalorder %s253, %s254
      %p266 = scmp.eq.s32.totalorder %s29, 1
      %p267 = por %p265, %p266
      %p269 = scmp.ne.s32.totalorder %s254, %s268
      %p270 = scmp.eq.s32.totalorder %s29, 0
      %p271 = por %p269, %p270
      %s272 = ssub.s32 %s23, %s30
      %p273 = scmp.eq.s32.totalorder %s272, 0
      %s275 = sadd.s32 %s274, 1
      %s276 = scalar_select %p273, %s274, %s275
      %p279 = pneg %p273
      %p280 = scmp.eq.s32.totalorder %s23, 1
      %p281 = por %p279, %p280
      %p282 = scmp.ne.s32.totalorder %s274, %s277
      %p283 = scmp.eq.s32.totalorder %s23, 0
      %p284 = por %p282, %p283
      %p285 = scmp.ne.s32.totalorder %s274, %s277
      %p286 = scmp.eq.s32.totalorder %s28, 1
      %p287 = por %p285, %p286
      %p288 = scmp.ne.s32.totalorder %s277, %s278
      %p289 = scmp.eq.s32.totalorder %s28, 0
      %p290 = por %p288, %p289
      %p291 = scmp.ne.s32.totalorder %s277, %s278
      %p292 = scmp.eq.s32.totalorder %s29, 1
      %p293 = por %p291, %p292
      %p295 = scmp.ne.s32.totalorder %s278, %s294
      %p296 = scmp.eq.s32.totalorder %s29, 0
      %p297 = por %p295, %p296
      %p298 = scmp.le.s32.totalorder 1, %s23
      %p299 = scmp.lt.s32.totalorder %s23, 3
      %p300 = pnand %p298, %p299
      %p301 = pneg %p300
      // Predicated region
      $region9: #{tpu_custom_call.1} parent=5 // pred_check
        _
      $region10: #{tpu_custom_call.1} parent=5 // pred_check_branch
        %303 = sbr.rel (%p300) target = $region12
      $region11: #{tpu_custom_call.1} parent=5 // pred_region
        %s304 = ssub.s32 %s23, 1
        // Predicated region
        $region13: #{tpu_custom_call.1} parent=11 // pred_check
          %p305 = pneg %p96
        $region14: #{tpu_custom_call.1} parent=11 // pred_check_branch
          %307 = sbr.rel (%p305) target = $region16
        $region15: #{tpu_custom_call.1} parent=11 // pred_region
          %309 = vsyncadd [#allocation5], 0
          %s311 = sshll.u32 %s2, 4
          %s312 = int_to_ptr.hbm [resolvable:$true] %s311
          %s313 = sshll.u32 [#allocation4], 4
          %s314 = int_to_ptr.vmem [resolvable:$true] %s313
          %316 = dma.hbm_to_vmem [thread:$0]  %s312, 64, %s314, [#allocation5]
        $region16: #{tpu_custom_call.1} parent=11 // pred_fallthru
          _
        // Predicated region
        $region17: #{tpu_custom_call.1} parent=11 // pred_check
          %p317 = pneg %p117
        $region18: #{tpu_custom_call.1} parent=11 // pred_check_branch
          %319 = sbr.rel (%p317) target = $region20
        $region19: #{tpu_custom_call.1} parent=11 // pred_region
          %321 = vsyncadd [#allocation8], 0
          %s323 = sshll.u32 %s3, 4
          %s324 = int_to_ptr.hbm [resolvable:$true] %s323
          %s325 = sshll.u32 [#allocation7], 4
          %s326 = int_to_ptr.vmem [resolvable:$true] %s325
          %328 = dma.hbm_to_vmem [thread:$0]  %s324, 64, %s326, [#allocation8]
        $region20: #{tpu_custom_call.1} parent=11 // pred_fallthru
          _
        // Predicated region
        $region21: #{tpu_custom_call.1} parent=11 // pred_check
          %p329 = pneg %p138
        $region22: #{tpu_custom_call.1} parent=11 // pred_check_branch
          %331 = sbr.rel (%p329) target = $region24
        $region23: #{tpu_custom_call.1} parent=11 // pred_region
          %333 = vsyncadd [#allocation8], 0
          %s335 = sshll.u32 %s4, 4
          %s336 = int_to_ptr.hbm [resolvable:$true] %s335
          %s337 = sshll.u32 [#allocation9], 4
          %s338 = int_to_ptr.vmem [resolvable:$true] %s337
          %340 = dma.hbm_to_vmem [thread:$0]  %s336, 64, %s338, [#allocation8]
        $region24: #{tpu_custom_call.1} parent=11 // pred_fallthru
          _
        // Predicated region
        $region25: #{tpu_custom_call.1} parent=11 // pred_check
          %p341 = pneg %p159
        $region26: #{tpu_custom_call.1} parent=11 // pred_check_branch
          %343 = sbr.rel (%p341) target = $region28
        $region27: #{tpu_custom_call.1} parent=11 // pred_region
          _
        $region28: #{tpu_custom_call.1} parent=11 // pred_fallthru
          _
        // Predicated region
        $region29: #{tpu_custom_call.1} parent=11 // pred_check
          %p344 = pneg %p180
        $region30: #{tpu_custom_call.1} parent=11 // pred_check_branch
          %346 = sbr.rel (%p344) target = $region32
        $region31: #{tpu_custom_call.1} parent=11 // pred_region
          _
        $region32: #{tpu_custom_call.1} parent=11 // pred_fallthru
          _
        // Predicated region
        $region33: #{tpu_custom_call.1} parent=11 // pred_check
          %p347 = pneg %p201
        $region34: #{tpu_custom_call.1} parent=11 // pred_check_branch
          %349 = sbr.rel (%p347) target = $region36
        $region35: #{tpu_custom_call.1} parent=11 // pred_region
          %351 = vsyncadd [#allocation11], 0
          %s352 = sshll.u32 %s7, 4
          %s353 = int_to_ptr.hbm [resolvable:$true] %s352
          %s354 = sshll.u32 [#allocation10], 4
          %s355 = int_to_ptr.vmem [resolvable:$true] %s354
          %360 = dma.hbm_to_vmem [thread:$0]  %s353, 256, %s355, [#allocation11], 64, 64, 4
        $region36: #{tpu_custom_call.1} parent=11 // pred_fallthru
          _
        // Predicated region
        $region37: #{tpu_custom_call.1} parent=11 // pred_check
          %p361 = pneg %p222
        $region38: #{tpu_custom_call.1} parent=11 // pred_check_branch
          %363 = sbr.rel (%p361) target = $region40
        $region39: #{tpu_custom_call.1} parent=11 // pred_region
          _
        $region40: #{tpu_custom_call.1} parent=11 // pred_fallthru
          _
        // Predicated region
        $region41: #{tpu_custom_call.1} parent=11 // pred_check
          %p364 = pneg %p243
        $region42: #{tpu_custom_call.1} parent=11 // pred_check_branch
          %366 = sbr.rel (%p364) target = $region44
        $region43: #{tpu_custom_call.1} parent=11 // pred_region
          _
        $region44: #{tpu_custom_call.1} parent=11 // pred_fallthru
          _
        // Predicated region
        $region45: #{tpu_custom_call.1} parent=11 // pred_check
          %p367 = pneg %p264
        $region46: #{tpu_custom_call.1} parent=11 // pred_check_branch
          %369 = sbr.rel (%p367) target = $region48
        $region47: #{tpu_custom_call.1} parent=11 // pred_region
          _
        $region48: #{tpu_custom_call.1} parent=11 // pred_fallthru
          _
      $region12: #{tpu_custom_call.1} parent=5 // pred_fallthru
        _
      %p370 = scmp.lt.s32.totalorder %s23, 2
      // Predicated region
      $region49: #{tpu_custom_call.1} parent=5 // pred_check
        %p371 = pneg %p370
      $region50: #{tpu_custom_call.1} parent=5 // pred_check_branch
        %373 = sbr.rel (%p371) target = $region52
      $region51: #{tpu_custom_call.1} parent=5 // pred_region
        // Predicated region
        $region53: #{tpu_custom_call.1} parent=51 // pred_check
          %p374 = pneg %p43
        $region54: #{tpu_custom_call.1} parent=51 // pred_check_branch
          %376 = sbr.rel (%p374) target = $region56
        $region55: #{tpu_custom_call.1} parent=51 // pred_region
          %p377 = scmp.lt.s32.totalorder %s23, 1
          %s378 = scalar_select %p377, %s23, 1
          %s379 = smul.addr %s378, 4
          %s380 = smul.addr %s379, 4
          %s381 = scalar_lea.vmem %s0, %s380
        $region56: #{tpu_custom_call.1} parent=51 // pred_fallthru
          _
        // Predicated region
        $region57: #{tpu_custom_call.1} parent=51 // pred_check
          %p382 = pneg %p69
        $region58: #{tpu_custom_call.1} parent=51 // pred_check_branch
          %384 = sbr.rel (%p382) target = $region60
        $region59: #{tpu_custom_call.1} parent=51 // pred_region
          %p385 = scmp.lt.s32.totalorder %s23, 1
          %s386 = scalar_select %p385, %s23, 1
          %s387 = smul.addr %s386, 4
          %s388 = smul.addr %s387, 4
          %s389 = scalar_lea.vmem %s1, %s388
        $region60: #{tpu_custom_call.1} parent=51 // pred_fallthru
          _
      $region52: #{tpu_custom_call.1} parent=5 // pred_fallthru
        _
      %p390 = scmp.le.s32.totalorder 1, %s23
      %p391 = scmp.lt.s32.totalorder %s23, 3
      %p392 = pnand %p390, %p391
      %p393 = pneg %p392
      // Predicated region
      $region61: #{tpu_custom_call.1} parent=5 // pred_check
        _
      $region62: #{tpu_custom_call.1} parent=5 // pred_check_branch
        %395 = sbr.rel (%p392) target = $region64
      $region63: #{tpu_custom_call.1} parent=5 // pred_region
        %s396 = ssub.s32 %s23, 1
        // Predicated region
        $region65: #{tpu_custom_call.1} parent=63 // pred_check
          %p397 = pneg %p96
        $region66: #{tpu_custom_call.1} parent=63 // pred_check_branch
          %399 = sbr.rel (%p397) target = $region68
        $region67: #{tpu_custom_call.1} parent=63 // pred_region
          %401 = dma.done [#allocation5], 64
        $region68: #{tpu_custom_call.1} parent=63 // pred_fallthru
          _
        // Predicated region
        $region69: #{tpu_custom_call.1} parent=63 // pred_check
          %p402 = pneg %p117
        $region70: #{tpu_custom_call.1} parent=63 // pred_check_branch
          %404 = sbr.rel (%p402) target = $region72
        $region71: #{tpu_custom_call.1} parent=63 // pred_region
          %406 = dma.done [#allocation8], 64
        $region72: #{tpu_custom_call.1} parent=63 // pred_fallthru
          _
        // Predicated region
        $region73: #{tpu_custom_call.1} parent=63 // pred_check
          %p407 = pneg %p138
        $region74: #{tpu_custom_call.1} parent=63 // pred_check_branch
          %409 = sbr.rel (%p407) target = $region76
        $region75: #{tpu_custom_call.1} parent=63 // pred_region
          %411 = dma.done [#allocation8], 64
        $region76: #{tpu_custom_call.1} parent=63 // pred_fallthru
          _
        // Predicated region
        $region77: #{tpu_custom_call.1} parent=63 // pred_check
          %p412 = pneg %p201
        $region78: #{tpu_custom_call.1} parent=63 // pred_check_branch
          %414 = sbr.rel (%p412) target = $region80
        $region79: #{tpu_custom_call.1} parent=63 // pred_region
          %416 = dma.done [#allocation11], 256
        $region80: #{tpu_custom_call.1} parent=63 // pred_fallthru
          _
        %p417 = scmp.lt.s32.totalorder %s28, 1
        %s418 = scalar_select %p417, %s28, 1
        %s419 = smul.addr %s418, 4
        %s420 = smul.addr %s419, 4
        %s421 = scalar_lea.vmem %s0, %s420
        %p422 = pneg %p49
        %p423 = pneg %p46
        %p424 = scmp.lt.s32.totalorder %s28, 1
        %s425 = scalar_select %p424, %s28, 1
        %s426 = smul.addr %s425, 4
        %s427 = smul.addr %s426, 4
        %s428 = scalar_lea.vmem %s1, %s427
        %p429 = pneg %p75
        %p430 = pneg %p72
        %p431 = pneg %p96
        %p432 = pneg %p93
        %p433 = pneg %p117
        %p434 = pneg %p114
        %p435 = pneg %p138
        %p436 = pneg %p135
        %p437 = pneg %p159
        %p438 = pneg %p156
        %p439 = pneg %p180
        %p440 = pneg %p177
        %p441 = pneg %p201
        %p442 = pneg %p198
        %p443 = pneg %p222
        %p444 = pneg %p219
        %p445 = pneg %p243
        %p446 = pneg %p240
        %p447 = pneg %p264
        %p448 = pneg %p261
        %p449 = pneg %p290
        %p450 = pneg %p287
        %s451 = sand.u32 %s277, 1
        %s452 = scalar_lea.sflag [#allocation6], %s451
        %s453 = sand.u32 %s277, 1
        %s454 = smul.addr %s453, 4
        %s455 = scalar_lea.vmem [#allocation12], %s454
        %p456 = scmp.lt.s32.totalorder %s28, 1
        %s457 = scalar_select %p456, %s28, 1
        %s458 = smul.addr %s457, 4
        %s459 = smul.addr %s458, 4
        %s460 = scalar_lea.vmem %s0, %s459
        %p461 = scmp.lt.s32.totalorder %s28, 1
        %s462 = scalar_select %p461, %s28, 1
        %s463 = smul.addr %s462, 4
        %s464 = smul.addr %s463, 4
        %s465 = scalar_lea.vmem %s1, %s464
        %v467 = vld [vmem:[%s465] sm:$0xf]
        %v468 = vld [vmem:[%s465 + $0x4] sm:$0xf]
        %v469 = vld [vmem:[%s465 + $0x8] sm:$0xf]
        %v470 = vld [vmem:[%s465 + $0xc] sm:$0xf]
        %v471 = vld [vmem:[%s460] sm:$0xf]
        %v472 = vld [vmem:[%s460 + $0x4] sm:$0xf]
        %v473 = vld [vmem:[%s460 + $0x8] sm:$0xf]
        %v474 = vld [vmem:[%s460 + $0xc] sm:$0xf]
        %v475 = vld [vmem:[#allocation4] sm:$0xf]
        %v476 = vld [vmem:[#allocation7] sm:$0xf]
        %v477 = vld [vmem:[#allocation9] sm:$0xf]
        %v478 = vld [vmem:[%s5] sm:$0xf]
        %v479 = vld [vmem:[%s5 + $0x4] sm:$0xf]
        %v480 = vld [vmem:[%s5 + $0x8] sm:$0xf]
        %v481 = vld [vmem:[%s5 + $0xc] sm:$0xf]
        %v482 = vld [vmem:[%s6] sm:$0x1]
        %v487 = vunpack.c.l.b16 %v467
        %v488 = vunpack.c.l.b16 %v468
        %v489 = vunpack.c.l.b16 %v469
        %v490 = vunpack.c.l.b16 %v470
        %v491 = vpack.c.b16 %v488, %v487
        %v492 = vpack.c.b16 %v490, %v489
        %vm493 = vcmask 64512
        %v495 = vsel %vm493, %v491, 0
        %v498 = vsel %vm493, %v492, 0
        %vm500 = vcmask 1043456
        %v502 = vsel %vm500, %v475, 0
        %504 = vmatpush.bf16.msra.mxu0 0
        %505 = vmatpush.bf16.msra.mxu0 0
        %506 = vmatpush.bf16.msra.mxu0 0
        %507 = vmatpush.bf16.msra.mxu0 0
        %508 = vmatpush.bf16.msra.mxu0 0
        %509 = vmatpush.bf16.msra.mxu0 0
        %510 = vmatpush.bf16.msra.mxu0 0
        %511 = vmatpush.bf16.msra.mxu0 %v502
        %512 = vmatmul.bf16.gmra.mxu0 %v495
        %v513 = vpop.f32.mrf.mxu0
        %v514 = vadd.f32 0.0, %v513
        %v515 = vpop.f32.mrf.mxu0
        %v516 = vadd.f32 0.0, %v515
        %517 = vmatmul.bf16.gmra.mxu0 %v498
        %v518 = vpop.f32.mrf.mxu0
        %v519 = vadd.f32 0.0, %v518
        %v520 = vpop.f32.mrf.mxu0
        %v521 = vadd.f32 0.0, %v520
        %522 = vdwg.mxu0
        %v523 = vpack.c.bf16 %v514, %v514
        %v524 = vpack.c.bf16 %v516, %v516
        %v525 = vpack.c.bf16 %v519, %v519
        %v526 = vpack.c.bf16 %v521, %v521
        %v528 = vsel %vm500, %v476, 0
        %530 = vmatpush.bf16.msra.mxu0 0
        %531 = vmatpush.bf16.msra.mxu0 0
        %532 = vmatpush.bf16.msra.mxu0 0
        %533 = vmatpush.bf16.msra.mxu0 0
        %534 = vmatpush.bf16.msra.mxu0 0
        %535 = vmatpush.bf16.msra.mxu0 0
        %536 = vmatpush.bf16.msra.mxu0 0
        %537 = vmatpush.bf16.msra.mxu0 %v528
        %538 = vmatmul.bf16.gmra.mxu0 %v495
        %v539 = vpop.f32.mrf.mxu0
        %v540 = vadd.f32 0.0, %v539
        %v541 = vpop.f32.mrf.mxu0
        %v542 = vadd.f32 0.0, %v541
        %543 = vmatmul.bf16.gmra.mxu0 %v498
        %v544 = vpop.f32.mrf.mxu0
        %v545 = vadd.f32 0.0, %v544
        %v546 = vpop.f32.mrf.mxu0
        %v547 = vadd.f32 0.0, %v546
        %548 = vdwg.mxu0
        %v549 = vpack.c.bf16 %v540, %v540
        %v550 = vpack.c.bf16 %v542, %v542
        %v551 = vpack.c.bf16 %v545, %v545
        %v552 = vpack.c.bf16 %v547, %v547
        %v554 = vsel %vm500, %v477, 0
        %556 = vmatpush.bf16.msra.mxu0 0
        %557 = vmatpush.bf16.msra.mxu0 0
        %558 = vmatpush.bf16.msra.mxu0 0
        %559 = vmatpush.bf16.msra.mxu0 0
        %560 = vmatpush.bf16.msra.mxu0 0
        %561 = vmatpush.bf16.msra.mxu0 0
        %562 = vmatpush.bf16.msra.mxu0 0
        %563 = vmatpush.bf16.msra.mxu0 %v554
        %564 = vmatmul.bf16.gmra.mxu0 %v495
        %v565 = vpop.f32.mrf.mxu0
        %v566 = vadd.f32 0.0, %v565
        %v567 = vpop.f32.mrf.mxu0
        %v568 = vadd.f32 0.0, %v567
        %569 = vmatmul.bf16.gmra.mxu0 %v498
        %v570 = vpop.f32.mrf.mxu0
        %v571 = vadd.f32 0.0, %v570
        %v572 = vpop.f32.mrf.mxu0
        %v573 = vadd.f32 0.0, %v572
        %574 = vdwg.mxu0
        %v575 = vpack.c.bf16 %v566, %v566
        %v576 = vpack.c.bf16 %v568, %v568
        %v577 = vpack.c.bf16 %v571, %v571
        %v578 = vpack.c.bf16 %v573, %v573
        %v580 = vsel %vm493, %v523, 0
        %v583 = vsel %vm493, %v549, 0
        %585 = vmatpush.bf16.xpose.msra.mxu0 0
        %586 = vmatpush.bf16.xpose.msra.mxu0 0
        %587 = vmatpush.bf16.xpose.msra.mxu0 0
        %588 = vmatpush.bf16.xpose.msra.mxu0 0
        %589 = vmatpush.bf16.xpose.msra.mxu0 0
        %590 = vmatpush.bf16.xpose.msra.mxu0 0
        %591 = vmatpush.bf16.xpose.msra.mxu0 0
        %592 = vmatpush.bf16.xpose.msra.mxu0 %v583
        %593 = vmatmul.bf16.gmra.mxu0 %v580
        %v594 = vpop.f32.mrf.mxu0
        %v595 = vadd.f32 0.0, %v594
        %v596 = vpop.f32.mrf.mxu0
        %597 = vdwg.mxu0
        %v599 = vsel %vm493, %v524, 0
        %v602 = vsel %vm493, %v550, 0
        %604 = vmatpush.bf16.xpose.msra.mxu0 0
        %605 = vmatpush.bf16.xpose.msra.mxu0 0
        %606 = vmatpush.bf16.xpose.msra.mxu0 0
        %607 = vmatpush.bf16.xpose.msra.mxu0 0
        %608 = vmatpush.bf16.xpose.msra.mxu0 0
        %609 = vmatpush.bf16.xpose.msra.mxu0 0
        %610 = vmatpush.bf16.xpose.msra.mxu0 0
        %611 = vmatpush.bf16.xpose.msra.mxu0 %v602
        %612 = vmatmul.bf16.gmra.mxu0 %v599
        %v613 = vpop.f32.mrf.mxu0
        %v614 = vadd.f32 0.0, %v613
        %v615 = vpop.f32.mrf.mxu0
        %616 = vdwg.mxu0
        %v618 = vsel %vm493, %v525, 0
        %v621 = vsel %vm493, %v551, 0
        %623 = vmatpush.bf16.xpose.msra.mxu0 0
        %624 = vmatpush.bf16.xpose.msra.mxu0 0
        %625 = vmatpush.bf16.xpose.msra.mxu0 0
        %626 = vmatpush.bf16.xpose.msra.mxu0 0
        %627 = vmatpush.bf16.xpose.msra.mxu0 0
        %628 = vmatpush.bf16.xpose.msra.mxu0 0
        %629 = vmatpush.bf16.xpose.msra.mxu0 0
        %630 = vmatpush.bf16.xpose.msra.mxu0 %v621
        %631 = vmatmul.bf16.gmra.mxu0 %v618
        %v632 = vpop.f32.mrf.mxu0
        %v633 = vadd.f32 0.0, %v632
        %v634 = vpop.f32.mrf.mxu0
        %635 = vdwg.mxu0
        %v637 = vsel %vm493, %v526, 0
        %v640 = vsel %vm493, %v552, 0
        %642 = vmatpush.bf16.xpose.msra.mxu0 0
        %643 = vmatpush.bf16.xpose.msra.mxu0 0
        %644 = vmatpush.bf16.xpose.msra.mxu0 0
        %645 = vmatpush.bf16.xpose.msra.mxu0 0
        %646 = vmatpush.bf16.xpose.msra.mxu0 0
        %647 = vmatpush.bf16.xpose.msra.mxu0 0
        %648 = vmatpush.bf16.xpose.msra.mxu0 0
        %649 = vmatpush.bf16.xpose.msra.mxu0 %v640
        %650 = vmatmul.bf16.gmra.mxu0 %v637
        %v651 = vpop.f32.mrf.mxu0
        %v652 = vadd.f32 0.0, %v651
        %v653 = vpop.f32.mrf.mxu0
        %654 = vdwg.mxu0
        %v655 = vsel %vm493, %v595, -inf
        %656 = vmax.xlane.f32.xlu0 %v655
        %v657 = vpop.xlane.xlu0 %656
        %v658 = vsel %vm493, %v614, -inf
        %659 = vmax.xlane.f32.xlu0 %v658
        %v660 = vpop.xlane.xlu0 %659
        %v661 = vsel %vm493, %v633, -inf
        %662 = vmax.xlane.f32.xlu0 %v661
        %v663 = vpop.xlane.xlu0 %662
        %v664 = vsel %vm493, %v652, -inf
        %665 = vmax.xlane.f32.xlu0 %v664
        %v666 = vpop.xlane.xlu0 %665
        %v667 = vsub.f32 %v595, %v657
        %v668 = vsub.f32 %v614, %v660
        %v669 = vsub.f32 %v633, %v663
        %v670 = vsub.f32 %v652, %v666
        %v671 = vmul.f32 %v667, 1.442695
        %v672 = vpow.pop %v671
        %v673 = vmul.f32 %v668, 1.442695
        %v674 = vpow.pop %v673
        %v675 = vmul.f32 %v669, 1.442695
        %v676 = vpow.pop %v675
        %v677 = vmul.f32 %v670, 1.442695
        %v678 = vpow.pop %v677
        %v679 = vsel %vm493, %v672, 0.0
        %680 = vadd.xlane.f32.xlu0 %v679
        %v681 = vpop.xlane.xlu0 %680
        %v682 = vsel %vm493, %v674, 0.0
        %683 = vadd.xlane.f32.xlu0 %v682
        %v684 = vpop.xlane.xlu0 %683
        %v685 = vsel %vm493, %v676, 0.0
        %686 = vadd.xlane.f32.xlu0 %v685
        %v687 = vpop.xlane.xlu0 %686
        %v688 = vsel %vm493, %v678, 0.0
        %689 = vadd.xlane.f32.xlu0 %v688
        %v690 = vpop.xlane.xlu0 %689
        %v691 = vrcp.pop %v681
        %v692 = vrcp.pop %v684
        %v693 = vrcp.pop %v687
        %v694 = vrcp.pop %v690
        %v695 = vmul.f32 %v672, %v691
        %v696 = vmul.f32 %v674, %v692
        %v697 = vmul.f32 %v676, %v693
        %v698 = vmul.f32 %v678, %v694
        %v699 = vpack.c.bf16 %v695, %v695
        %v700 = vpack.c.bf16 %v696, %v696
        %v701 = vpack.c.bf16 %v697, %v697
        %v702 = vpack.c.bf16 %v698, %v698
        %v704 = vsel %vm493, %v699, 0
        %v707 = vsel %vm500, %v575, 0
        %709 = vmatpush.bf16.msra.mxu0 0
        %710 = vmatpush.bf16.msra.mxu0 0
        %711 = vmatpush.bf16.msra.mxu0 0
        %712 = vmatpush.bf16.msra.mxu0 0
        %713 = vmatpush.bf16.msra.mxu0 0
        %714 = vmatpush.bf16.msra.mxu0 0
        %715 = vmatpush.bf16.msra.mxu0 0
        %716 = vmatpush.bf16.msra.mxu0 %v707
        %717 = vmatmul.bf16.gmra.mxu0 %v704
        %v718 = vpop.f32.mrf.mxu0
        %v719 = vadd.f32 0.0, %v718
        %v720 = vpop.f32.mrf.mxu0
        %721 = vdwg.mxu0
        %v723 = vsel %vm493, %v700, 0
        %v726 = vsel %vm500, %v576, 0
        %728 = vmatpush.bf16.msra.mxu0 0
        %729 = vmatpush.bf16.msra.mxu0 0
        %730 = vmatpush.bf16.msra.mxu0 0
        %731 = vmatpush.bf16.msra.mxu0 0
        %732 = vmatpush.bf16.msra.mxu0 0
        %733 = vmatpush.bf16.msra.mxu0 0
        %734 = vmatpush.bf16.msra.mxu0 0
        %735 = vmatpush.bf16.msra.mxu0 %v726
        %736 = vmatmul.bf16.gmra.mxu0 %v723
        %v737 = vpop.f32.mrf.mxu0
        %v738 = vadd.f32 0.0, %v737
        %v739 = vpop.f32.mrf.mxu0
        %740 = vdwg.mxu0
        %v742 = vsel %vm493, %v701, 0
        %v745 = vsel %vm500, %v577, 0
        %747 = vmatpush.bf16.msra.mxu0 0
        %748 = vmatpush.bf16.msra.mxu0 0
        %749 = vmatpush.bf16.msra.mxu0 0
        %750 = vmatpush.bf16.msra.mxu0 0
        %751 = vmatpush.bf16.msra.mxu0 0
        %752 = vmatpush.bf16.msra.mxu0 0
        %753 = vmatpush.bf16.msra.mxu0 0
        %754 = vmatpush.bf16.msra.mxu0 %v745
        %755 = vmatmul.bf16.gmra.mxu0 %v742
        %v756 = vpop.f32.mrf.mxu0
        %v757 = vadd.f32 0.0, %v756
        %v758 = vpop.f32.mrf.mxu0
        %759 = vdwg.mxu0
        %v761 = vsel %vm493, %v702, 0
        %v764 = vsel %vm500, %v578, 0
        %766 = vmatpush.bf16.msra.mxu0 0
        %767 = vmatpush.bf16.msra.mxu0 0
        %768 = vmatpush.bf16.msra.mxu0 0
        %769 = vmatpush.bf16.msra.mxu0 0
        %770 = vmatpush.bf16.msra.mxu0 0
        %771 = vmatpush.bf16.msra.mxu0 0
        %772 = vmatpush.bf16.msra.mxu0 0
        %773 = vmatpush.bf16.msra.mxu0 %v764
        %774 = vmatmul.bf16.gmra.mxu0 %v761
        %v775 = vpop.f32.mrf.mxu0
        %v776 = vadd.f32 0.0, %v775
        %v777 = vpop.f32.mrf.mxu0
        %778 = vdwg.mxu0
        %v779 = vpack.c.bf16 %v719, %v719
        %v780 = vpack.c.bf16 %v738, %v738
        %v781 = vpack.c.bf16 %v757, %v757
        %v782 = vpack.c.bf16 %v776, %v776
        %vm783 = vcmask 60416
        %784 = vst.msk [vmem:[#allocation2] sm:$0xf] %vm783, %v779
        %786 = vrot.lane.b32.xlu0 %v780, 8
        %v787 = vpop.permute.xlu0 %786
        %vm789 = vcmask 126016
        %790 = vst.msk [vmem:[#allocation2] sm:$0xf] %vm789, %v787
        %792 = vrot.lane.b32.xlu0 %v781, 16
        %v793 = vpop.permute.xlu0 %792
        %vm795 = vcmask 191616
        %796 = vst.msk [vmem:[#allocation2] sm:$0xf] %vm795, %v793
        %798 = vrot.lane.b32.xlu0 %v782, 24
        %v799 = vpop.permute.xlu0 %798
        %vm801 = vcmask 257216
        %802 = vst.msk [vmem:[#allocation2] sm:$0xf] %vm801, %v799
        %v803 = vld [vmem:[#allocation2] sm:$0xf]
        %v805 = vperm.slane %v482, 0
        %v811 = vunpack.c.l.b16 %v478
        %v812 = vunpack.c.l.b16 %v479
        %v813 = vunpack.c.l.b16 %v480
        %v814 = vunpack.c.l.b16 %v481
        %v815 = vpack.c.b16 %v812, %v811
        %v816 = vpack.c.b16 %v814, %v813
        %vm819 = vcmask 261120
        %v821 = vsel %vm819, %v803, 0
        %823 = vmatpush.bf16.msra.mxu0 0
        %824 = vmatpush.bf16.msra.mxu0 0
        %825 = vmatpush.bf16.msra.mxu0 0
        %826 = vmatpush.bf16.msra.mxu0 0
        %827 = vmatpush.bf16.msra.mxu0 0
        %828 = vmatpush.bf16.msra.mxu0 0
        %829 = vmatpush.bf16.msra.mxu0 %v816
        %830 = vmatpush.bf16.msra.mxu0 %v815
        %831 = vmatmul.bf16.gmra.mxu0 %v821
        %v832 = vpop.f32.mrf.mxu0
        %v833 = vadd.f32 %v805, %v832
        %v834 = vpop.f32.mrf.mxu0
        %835 = vdwg.mxu0
        %v836 = vunpack.c.l.bf16 %v467
        %v837 = vadd.f32 %v833, %v836
        %v838 = vpack.c.bf16 %v837, %v837
        %839 = vst.msk [vmem:[#allocation3] sm:$0xf] %vm783, %v838
        %v840 = vunpack.c.l.bf16 %v468
        %842 = vrot.lane.b32.xlu0 %v840, 8
        %v843 = vpop.permute.xlu0 %842
        %v845 = vadd.f32 %v833, %v843
        %v846 = vpack.c.bf16 %v845, %v845
        %848 = vrot.lane.b32.xlu0 %v846, 120
        %v849 = vpop.permute.xlu0 %848
        %s851 = scalar_lea.vmem [#allocation3], 4
        %852 = vst.msk [vmem:[%s851] sm:$0xf] %vm783, %v849
        %v853 = vunpack.c.l.bf16 %v469
        %855 = vrot.lane.b32.xlu0 %v853, 16
        %v856 = vpop.permute.xlu0 %855
        %v858 = vadd.f32 %v833, %v856
        %v859 = vpack.c.bf16 %v858, %v858
        %861 = vrot.lane.b32.xlu0 %v859, 112
        %v862 = vpop.permute.xlu0 %861
        %s864 = scalar_lea.vmem [#allocation3], 8
        %865 = vst.msk [vmem:[%s864] sm:$0xf] %vm783, %v862
        %v866 = vunpack.c.l.bf16 %v470
        %868 = vrot.lane.b32.xlu0 %v866, 24
        %v869 = vpop.permute.xlu0 %868
        %v871 = vadd.f32 %v833, %v869
        %v872 = vpack.c.bf16 %v871, %v871
        %874 = vrot.lane.b32.xlu0 %v872, 104
        %v875 = vpop.permute.xlu0 %874
        %s877 = scalar_lea.vmem [#allocation3], 12
        %878 = vst.msk [vmem:[%s877] sm:$0xf] %vm783, %v875
        %v879 = vld [vmem:[#allocation3] sm:$0xf]
        %v880 = vld [vmem:[#allocation3 + $0x4] sm:$0xf]
        %v881 = vld [vmem:[#allocation3 + $0x8] sm:$0xf]
        %v882 = vld [vmem:[#allocation3 + $0xc] sm:$0xf]
        %v887 = vunpack.c.l.b16 %v879
        %v888 = vunpack.c.l.b16 %v880
        %v889 = vunpack.c.l.b16 %v881
        %v890 = vunpack.c.l.b16 %v882
        %v891 = vpack.c.b16 %v888, %v887
        %v892 = vpack.c.b16 %v890, %v889
        %v894 = vsel %vm493, %v891, 0
        %v897 = vsel %vm493, %v892, 0
        %899 = vmatpush.bf16.msra.mxu0 0
        %900 = vmatpush.bf16.msra.mxu0 0
        %901 = vmatpush.bf16.msra.mxu0 0
        %902 = vmatpush.bf16.msra.mxu0 0
        %903 = vmatpush.bf16.msra.mxu0 0
        %904 = vmatpush.bf16.msra.mxu0 0
        %905 = vmatpush.bf16.msra.mxu0 0
        %906 = vmatpush.bf16.msra.mxu0 %v502
        %907 = vmatmul.bf16.gmra.mxu0 %v894
        %v908 = vpop.f32.mrf.mxu0
        %v909 = vadd.f32 0.0, %v908
        %v910 = vpop.f32.mrf.mxu0
        %v911 = vadd.f32 0.0, %v910
        %912 = vmatmul.bf16.gmra.mxu0 %v897
        %v913 = vpop.f32.mrf.mxu0
        %v914 = vadd.f32 0.0, %v913
        %v915 = vpop.f32.mrf.mxu0
        %v916 = vadd.f32 0.0, %v915
        %917 = vdwg.mxu0
        %v918 = vpack.c.bf16 %v909, %v909
        %v919 = vpack.c.bf16 %v911, %v911
        %v920 = vpack.c.bf16 %v914, %v914
        %v921 = vpack.c.bf16 %v916, %v916
        %v926 = vunpack.c.l.b16 %v471
        %v927 = vunpack.c.l.b16 %v472
        %v928 = vunpack.c.l.b16 %v473
        %v929 = vunpack.c.l.b16 %v474
        %v930 = vpack.c.b16 %v927, %v926
        %v931 = vpack.c.b16 %v929, %v928
        %v933 = vsel %vm493, %v930, 0
        %v936 = vsel %vm493, %v931, 0
        %938 = vmatpush.bf16.msra.mxu0 0
        %939 = vmatpush.bf16.msra.mxu0 0
        %940 = vmatpush.bf16.msra.mxu0 0
        %941 = vmatpush.bf16.msra.mxu0 0
        %942 = vmatpush.bf16.msra.mxu0 0
        %943 = vmatpush.bf16.msra.mxu0 0
        %944 = vmatpush.bf16.msra.mxu0 0
        %945 = vmatpush.bf16.msra.mxu0 %v528
        %946 = vmatmul.bf16.gmra.mxu0 %v933
        %v947 = vpop.f32.mrf.mxu0
        %v948 = vadd.f32 0.0, %v947
        %v949 = vpop.f32.mrf.mxu0
        %v950 = vadd.f32 0.0, %v949
        %951 = vmatmul.bf16.gmra.mxu0 %v936
        %v952 = vpop.f32.mrf.mxu0
        %v953 = vadd.f32 0.0, %v952
        %v954 = vpop.f32.mrf.mxu0
        %v955 = vadd.f32 0.0, %v954
        %956 = vdwg.mxu0
        %v957 = vpack.c.bf16 %v948, %v948
        %v958 = vpack.c.bf16 %v950, %v950
        %v959 = vpack.c.bf16 %v953, %v953
        %v960 = vpack.c.bf16 %v955, %v955
        %961 = vmatpush.bf16.msra.mxu0 0
        %962 = vmatpush.bf16.msra.mxu0 0
        %963 = vmatpush.bf16.msra.mxu0 0
        %964 = vmatpush.bf16.msra.mxu0 0
        %965 = vmatpush.bf16.msra.mxu0 0
        %966 = vmatpush.bf16.msra.mxu0 0
        %967 = vmatpush.bf16.msra.mxu0 0
        %968 = vmatpush.bf16.msra.mxu0 %v554
        %969 = vmatmul.bf16.gmra.mxu0 %v894
        %v970 = vpop.f32.mrf.mxu0
        %v971 = vadd.f32 0.0, %v970
        %v972 = vpop.f32.mrf.mxu0
        %v973 = vadd.f32 0.0, %v972
        %974 = vmatmul.bf16.gmra.mxu0 %v897
        %v975 = vpop.f32.mrf.mxu0
        %v976 = vadd.f32 0.0, %v975
        %v977 = vpop.f32.mrf.mxu0
        %v978 = vadd.f32 0.0, %v977
        %979 = vdwg.mxu0
        %v980 = vpack.c.bf16 %v971, %v971
        %v981 = vpack.c.bf16 %v973, %v973
        %v982 = vpack.c.bf16 %v976, %v976
        %v983 = vpack.c.bf16 %v978, %v978
        %v985 = vsel %vm493, %v918, 0
        %v988 = vsel %vm493, %v957, 0
        %990 = vmatpush.bf16.xpose.msra.mxu0 0
        %991 = vmatpush.bf16.xpose.msra.mxu0 0
        %992 = vmatpush.bf16.xpose.msra.mxu0 0
        %993 = vmatpush.bf16.xpose.msra.mxu0 0
        %994 = vmatpush.bf16.xpose.msra.mxu0 0
        %995 = vmatpush.bf16.xpose.msra.mxu0 0
        %996 = vmatpush.bf16.xpose.msra.mxu0 0
        %997 = vmatpush.bf16.xpose.msra.mxu0 %v988
        %998 = vmatmul.bf16.gmra.mxu0 %v985
        %v999 = vpop.f32.mrf.mxu0
        %v1000 = vadd.f32 0.0, %v999
        %v1001 = vpop.f32.mrf.mxu0
        %1002 = vdwg.mxu0
        %v1004 = vsel %vm493, %v919, 0
        %v1007 = vsel %vm493, %v958, 0
        %1009 = vmatpush.bf16.xpose.msra.mxu0 0
        %1010 = vmatpush.bf16.xpose.msra.mxu0 0
        %1011 = vmatpush.bf16.xpose.msra.mxu0 0
        %1012 = vmatpush.bf16.xpose.msra.mxu0 0
        %1013 = vmatpush.bf16.xpose.msra.mxu0 0
        %1014 = vmatpush.bf16.xpose.msra.mxu0 0
        %1015 = vmatpush.bf16.xpose.msra.mxu0 0
        %1016 = vmatpush.bf16.xpose.msra.mxu0 %v1007
        %1017 = vmatmul.bf16.gmra.mxu0 %v1004
        %v1018 = vpop.f32.mrf.mxu0
        %v1019 = vadd.f32 0.0, %v1018
        %v1020 = vpop.f32.mrf.mxu0
        %1021 = vdwg.mxu0
        %v1023 = vsel %vm493, %v920, 0
        %v1026 = vsel %vm493, %v959, 0
        %1028 = vmatpush.bf16.xpose.msra.mxu0 0
        %1029 = vmatpush.bf16.xpose.msra.mxu0 0
        %1030 = vmatpush.bf16.xpose.msra.mxu0 0
        %1031 = vmatpush.bf16.xpose.msra.mxu0 0
        %1032 = vmatpush.bf16.xpose.msra.mxu0 0
        %1033 = vmatpush.bf16.xpose.msra.mxu0 0
        %1034 = vmatpush.bf16.xpose.msra.mxu0 0
        %1035 = vmatpush.bf16.xpose.msra.mxu0 %v1026
        %1036 = vmatmul.bf16.gmra.mxu0 %v1023
        %v1037 = vpop.f32.mrf.mxu0
        %v1038 = vadd.f32 0.0, %v1037
        %v1039 = vpop.f32.mrf.mxu0
        %1040 = vdwg.mxu0
        %v1042 = vsel %vm493, %v921, 0
        %v1045 = vsel %vm493, %v960, 0
        %1047 = vmatpush.bf16.xpose.msra.mxu0 0
        %1048 = vmatpush.bf16.xpose.msra.mxu0 0
        %1049 = vmatpush.bf16.xpose.msra.mxu0 0
        %1050 = vmatpush.bf16.xpose.msra.mxu0 0
        %1051 = vmatpush.bf16.xpose.msra.mxu0 0
        %1052 = vmatpush.bf16.xpose.msra.mxu0 0
        %1053 = vmatpush.bf16.xpose.msra.mxu0 0
        %1054 = vmatpush.bf16.xpose.msra.mxu0 %v1045
        %1055 = vmatmul.bf16.gmra.mxu0 %v1042
        %v1056 = vpop.f32.mrf.mxu0
        %v1057 = vadd.f32 0.0, %v1056
        %v1058 = vpop.f32.mrf.mxu0
        %1059 = vdwg.mxu0
        %v1060 = vsel %vm493, %v1000, -inf
        %1061 = vmax.xlane.f32.xlu0 %v1060
        %v1062 = vpop.xlane.xlu0 %1061
        %v1063 = vsel %vm493, %v1019, -inf
        %1064 = vmax.xlane.f32.xlu0 %v1063
        %v1065 = vpop.xlane.xlu0 %1064
        %v1066 = vsel %vm493, %v1038, -inf
        %1067 = vmax.xlane.f32.xlu0 %v1066
        %v1068 = vpop.xlane.xlu0 %1067
        %v1069 = vsel %vm493, %v1057, -inf
        %1070 = vmax.xlane.f32.xlu0 %v1069
        %v1071 = vpop.xlane.xlu0 %1070
        %v1072 = vsub.f32 %v1000, %v1062
        %v1073 = vsub.f32 %v1019, %v1065
        %v1074 = vsub.f32 %v1038, %v1068
        %v1075 = vsub.f32 %v1057, %v1071
        %v1076 = vmul.f32 %v1072, 1.442695
        %v1077 = vpow.pop %v1076
        %v1078 = vmul.f32 %v1073, 1.442695
        %v1079 = vpow.pop %v1078
        %v1080 = vmul.f32 %v1074, 1.442695
        %v1081 = vpow.pop %v1080
        %v1082 = vmul.f32 %v1075, 1.442695
        %v1083 = vpow.pop %v1082
        %v1084 = vsel %vm493, %v1077, 0.0
        %1085 = vadd.xlane.f32.xlu0 %v1084
        %v1086 = vpop.xlane.xlu0 %1085
        %v1087 = vsel %vm493, %v1079, 0.0
        %1088 = vadd.xlane.f32.xlu0 %v1087
        %v1089 = vpop.xlane.xlu0 %1088
        %v1090 = vsel %vm493, %v1081, 0.0
        %1091 = vadd.xlane.f32.xlu0 %v1090
        %v1092 = vpop.xlane.xlu0 %1091
        %v1093 = vsel %vm493, %v1083, 0.0
        %1094 = vadd.xlane.f32.xlu0 %v1093
        %v1095 = vpop.xlane.xlu0 %1094
        %v1096 = vrcp.pop %v1086
        %v1097 = vrcp.pop %v1089
        %v1098 = vrcp.pop %v1092
        %v1099 = vrcp.pop %v1095
        %v1100 = vmul.f32 %v1077, %v1096
        %v1101 = vmul.f32 %v1079, %v1097
        %v1102 = vmul.f32 %v1081, %v1098
        %v1103 = vmul.f32 %v1083, %v1099
        %v1104 = vpack.c.bf16 %v1100, %v1100
        %v1105 = vpack.c.bf16 %v1101, %v1101
        %v1106 = vpack.c.bf16 %v1102, %v1102
        %v1107 = vpack.c.bf16 %v1103, %v1103
        %v1109 = vsel %vm493, %v1104, 0
        %v1112 = vsel %vm500, %v980, 0
        %1114 = vmatpush.bf16.msra.mxu0 0
        %1115 = vmatpush.bf16.msra.mxu0 0
        %1116 = vmatpush.bf16.msra.mxu0 0
        %1117 = vmatpush.bf16.msra.mxu0 0
        %1118 = vmatpush.bf16.msra.mxu0 0
        %1119 = vmatpush.bf16.msra.mxu0 0
        %1120 = vmatpush.bf16.msra.mxu0 0
        %1121 = vmatpush.bf16.msra.mxu0 %v1112
        %1122 = vmatmul.bf16.gmra.mxu0 %v1109
        %v1123 = vpop.f32.mrf.mxu0
        %v1124 = vadd.f32 0.0, %v1123
        %v1125 = vpop.f32.mrf.mxu0
        %1126 = vdwg.mxu0
        %v1128 = vsel %vm493, %v1105, 0
        %v1131 = vsel %vm500, %v981, 0
        %1133 = vmatpush.bf16.msra.mxu0 0
        %1134 = vmatpush.bf16.msra.mxu0 0
        %1135 = vmatpush.bf16.msra.mxu0 0
        %1136 = vmatpush.bf16.msra.mxu0 0
        %1137 = vmatpush.bf16.msra.mxu0 0
        %1138 = vmatpush.bf16.msra.mxu0 0
        %1139 = vmatpush.bf16.msra.mxu0 0
        %1140 = vmatpush.bf16.msra.mxu0 %v1131
        %1141 = vmatmul.bf16.gmra.mxu0 %v1128
        %v1142 = vpop.f32.mrf.mxu0
        %v1143 = vadd.f32 0.0, %v1142
        %v1144 = vpop.f32.mrf.mxu0
        %1145 = vdwg.mxu0
        %v1147 = vsel %vm493, %v1106, 0
        %v1150 = vsel %vm500, %v982, 0
        %1152 = vmatpush.bf16.msra.mxu0 0
        %1153 = vmatpush.bf16.msra.mxu0 0
        %1154 = vmatpush.bf16.msra.mxu0 0
        %1155 = vmatpush.bf16.msra.mxu0 0
        %1156 = vmatpush.bf16.msra.mxu0 0
        %1157 = vmatpush.bf16.msra.mxu0 0
        %1158 = vmatpush.bf16.msra.mxu0 0
        %1159 = vmatpush.bf16.msra.mxu0 %v1150
        %1160 = vmatmul.bf16.gmra.mxu0 %v1147
        %v1161 = vpop.f32.mrf.mxu0
        %v1162 = vadd.f32 0.0, %v1161
        %v1163 = vpop.f32.mrf.mxu0
        %1164 = vdwg.mxu0
        %v1166 = vsel %vm493, %v1107, 0
        %v1169 = vsel %vm500, %v983, 0
        %1171 = vmatpush.bf16.msra.mxu0 0
        %1172 = vmatpush.bf16.msra.mxu0 0
        %1173 = vmatpush.bf16.msra.mxu0 0
        %1174 = vmatpush.bf16.msra.mxu0 0
        %1175 = vmatpush.bf16.msra.mxu0 0
        %1176 = vmatpush.bf16.msra.mxu0 0
        %1177 = vmatpush.bf16.msra.mxu0 0
        %1178 = vmatpush.bf16.msra.mxu0 %v1169
        %1179 = vmatmul.bf16.gmra.mxu0 %v1166
        %v1180 = vpop.f32.mrf.mxu0
        %v1181 = vadd.f32 0.0, %v1180
        %v1182 = vpop.f32.mrf.mxu0
        %1183 = vdwg.mxu0
        %v1184 = vpack.c.bf16 %v1124, %v1124
        %v1185 = vpack.c.bf16 %v1143, %v1143
        %v1186 = vpack.c.bf16 %v1162, %v1162
        %v1187 = vpack.c.bf16 %v1181, %v1181
        %1188 = vst.msk [vmem:[#allocation2] sm:$0xf] %vm783, %v1184
        %1190 = vrot.lane.b32.xlu0 %v1185, 8
        %v1191 = vpop.permute.xlu0 %1190
        %1193 = vst.msk [vmem:[#allocation2] sm:$0xf] %vm789, %v1191
        %1195 = vrot.lane.b32.xlu0 %v1186, 16
        %v1196 = vpop.permute.xlu0 %1195
        %1198 = vst.msk [vmem:[#allocation2] sm:$0xf] %vm795, %v1196
        %1200 = vrot.lane.b32.xlu0 %v1187, 24
        %v1201 = vpop.permute.xlu0 %1200
        %1203 = vst.msk [vmem:[#allocation2] sm:$0xf] %vm801, %v1201
        %v1204 = vld [vmem:[#allocation2] sm:$0xf]
        %v1206 = vsel %vm819, %v1204, 0
        %1208 = vmatpush.bf16.msra.mxu0 0
        %1209 = vmatpush.bf16.msra.mxu0 0
        %1210 = vmatpush.bf16.msra.mxu0 0
        %1211 = vmatpush.bf16.msra.mxu0 0
        %1212 = vmatpush.bf16.msra.mxu0 0
        %1213 = vmatpush.bf16.msra.mxu0 0
        %1214 = vmatpush.bf16.msra.mxu0 %v816
        %1215 = vmatpush.bf16.msra.mxu0 %v815
        %1216 = vmatmul.bf16.gmra.mxu0 %v1206
        %v1217 = vpop.f32.mrf.mxu0
        %v1218 = vadd.f32 %v805, %v1217
        %v1219 = vpop.f32.mrf.mxu0
        %1220 = vdwg.mxu0
        %v1221 = vpack.c.bf16 %v1218, %v1218
        %v1222 = vld [vmem:[#allocation10] sm:$0xf]
        %v1223 = vld [vmem:[#allocation10 + $0x4] sm:$0xf]
        %v1224 = vld [vmem:[#allocation10 + $0x8] sm:$0xf]
        %v1225 = vld [vmem:[#allocation10 + $0xc] sm:$0xf]
        %v1226 = vld [vmem:[%s8] sm:$0x1]
        %v1228 = vperm.slane %v1226, 0
        %v1234 = vunpack.c.l.b16 %v1222
        %v1235 = vunpack.c.l.b16 %v1223
        %v1236 = vunpack.c.l.b16 %v1224
        %v1237 = vunpack.c.l.b16 %v1225
        %v1238 = vpack.c.b16 %v1235, %v1234
        %v1239 = vpack.c.b16 %v1237, %v1236
        %v1243 = vsel %vm819, %v1221, 0
        %1245 = vmatpush.bf16.msra.mxu0 0
        %1246 = vmatpush.bf16.msra.mxu0 0
        %1247 = vmatpush.bf16.msra.mxu0 0
        %1248 = vmatpush.bf16.msra.mxu0 0
        %1249 = vmatpush.bf16.msra.mxu0 0
        %1250 = vmatpush.bf16.msra.mxu0 0
        %1251 = vmatpush.bf16.msra.mxu0 %v1239
        %1252 = vmatpush.bf16.msra.mxu0 %v1238
        %1253 = vmatmul.bf16.gmra.mxu0 %v1243
        %v1254 = vpop.f32.mrf.mxu0
        %v1255 = vadd.f32 %v1228, %v1254
        %v1256 = vpop.f32.mrf.mxu0
        %1257 = vdwg.mxu0
        %v1258 = vmax.f32 %v1255, 0.0
        %v1259 = vpack.c.bf16 %v1258, %v1258
        %v1260 = vld [vmem:[%s9] sm:$0xf]
        %v1261 = vld [vmem:[%s9 + $0x4] sm:$0xf]
        %v1262 = vld [vmem:[%s9 + $0x8] sm:$0xf]
        %v1263 = vld [vmem:[%s9 + $0xc] sm:$0xf]
        %v1264 = vld [vmem:[%s9 + $0x10] sm:$0xf]
        %v1265 = vld [vmem:[%s9 + $0x14] sm:$0xf]
        %v1266 = vld [vmem:[%s9 + $0x18] sm:$0xf]
        %v1267 = vld [vmem:[%s9 + $0x1c] sm:$0xf]
        %v1268 = vld [vmem:[%s9 + $0x20] sm:$0xf]
        %v1269 = vld [vmem:[%s9 + $0x24] sm:$0xf]
        %v1270 = vld [vmem:[%s9 + $0x28] sm:$0xf]
        %v1271 = vld [vmem:[%s9 + $0x2c] sm:$0xf]
        %v1272 = vld [vmem:[%s9 + $0x30] sm:$0xf]
        %v1273 = vld [vmem:[%s9 + $0x34] sm:$0xf]
        %v1274 = vld [vmem:[%s9 + $0x38] sm:$0xf]
        %v1275 = vld [vmem:[%s9 + $0x3c] sm:$0xf]
        %v1276 = vld [vmem:[%s10] sm:$0x1]
        %v1278 = vperm.slane %v1276, 0
        %v1296 = vunpack.c.l.b16 %v1260
        %v1297 = vunpack.c.l.b16 %v1261
        %v1298 = vunpack.c.l.b16 %v1262
        %v1299 = vunpack.c.l.b16 %v1263
        %v1300 = vunpack.c.l.b16 %v1264
        %v1301 = vunpack.c.l.b16 %v1265
        %v1302 = vunpack.c.l.b16 %v1266
        %v1303 = vunpack.c.l.b16 %v1267
        %v1304 = vunpack.c.l.b16 %v1268
        %v1305 = vunpack.c.l.b16 %v1269
        %v1306 = vunpack.c.l.b16 %v1270
        %v1307 = vunpack.c.l.b16 %v1271
        %v1308 = vunpack.c.l.b16 %v1272
        %v1309 = vunpack.c.l.b16 %v1273
        %v1310 = vunpack.c.l.b16 %v1274
        %v1311 = vunpack.c.l.b16 %v1275
        %v1312 = vpack.c.b16 %v1297, %v1296
        %v1313 = vpack.c.b16 %v1299, %v1298
        %v1314 = vpack.c.b16 %v1301, %v1300
        %v1315 = vpack.c.b16 %v1303, %v1302
        %v1316 = vpack.c.b16 %v1305, %v1304
        %v1317 = vpack.c.b16 %v1307, %v1306
        %v1318 = vpack.c.b16 %v1309, %v1308
        %v1319 = vpack.c.b16 %v1311, %v1310
        %1328 = vmatpush.bf16.msra.mxu0 %v1319
        %1329 = vmatpush.bf16.msra.mxu0 %v1318
        %1330 = vmatpush.bf16.msra.mxu0 %v1317
        %1331 = vmatpush.bf16.msra.mxu0 %v1316
        %1332 = vmatpush.bf16.msra.mxu0 %v1315
        %1333 = vmatpush.bf16.msra.mxu0 %v1314
        %1334 = vmatpush.bf16.msra.mxu0 %v1313
        %1335 = vmatpush.bf16.msra.mxu0 %v1312
        %1336 = vmatmul.bf16.gmra.mxu0 %v1259
        %v1337 = vpop.f32.mrf.mxu0
        %v1338 = vadd.f32 %v1278, %v1337
        %v1339 = vpop.f32.mrf.mxu0
        %1340 = vdwg.mxu0
        %v1341 = vmax.f32 %v1338, 0.0
        %v1342 = vpack.c.bf16 %v1341, %v1341
        %vm1343 = vcmask 257024
        %1344 = vst.msk [vmem:[%s455] sm:$0xf] %vm1343, %v1342
        %s1345 = sand.u32 %s277, 1
        %s1346 = scalar_lea.sflag [#allocation6], %s1345
        %s1347 = sand.u32 %s277, 1
        %s1348 = smul.addr %s1347, 4
        %s1349 = scalar_lea.vmem [#allocation12], %s1348
        // Predicated region
        $region81: #{tpu_custom_call.1} parent=63 // pred_check
          %p1350 = pneg %p287
        $region82: #{tpu_custom_call.1} parent=63 // pred_check_branch
          %1352 = sbr.rel (%p1350) target = $region84
        $region83: #{tpu_custom_call.1} parent=63 // pred_region
          %1354 = vsyncadd %s1346, 0
          %s1355 = smul.addr %s28, 4
          %s1356 = scalar_lea.hbm %s11, %s1355
          %s1358 = sshll.u32 %s1349, 4
          %s1359 = int_to_ptr.vmem [resolvable:$true] %s1358
          %s1360 = sshll.u32 %s1356, 4
          %s1361 = int_to_ptr.hbm [resolvable:$true] %s1360
          %1363 = dma.vmem_to_hbm [thread:$0]  %s1359, 64, %s1361, %s1346
        $region84: #{tpu_custom_call.1} parent=63 // pred_fallthru
          _
      $region64: #{tpu_custom_call.1} parent=5 // pred_fallthru
        _
      %p1364 = scmp.le.s32.totalorder 2, %s23
      // Predicated region
      $region85: #{tpu_custom_call.1} parent=5 // pred_check
        %p1365 = pneg %p1364
      $region86: #{tpu_custom_call.1} parent=5 // pred_check_branch
        %1367 = sbr.rel (%p1365) target = $region88
      $region87: #{tpu_custom_call.1} parent=5 // pred_region
        %s1368 = ssub.s32 %s23, 2
        // Predicated region
        $region89: #{tpu_custom_call.1} parent=87 // pred_check
          %p1369 = pneg %p293
        $region90: #{tpu_custom_call.1} parent=87 // pred_check_branch
          %1371 = sbr.rel (%p1369) target = $region92
        $region91: #{tpu_custom_call.1} parent=87 // pred_region
          %s1372 = sand.u32 %s278, 1
          %s1373 = scalar_lea.sflag [#allocation6], %s1372
          %s1374 = sand.u32 %s278, 1
          %s1375 = smul.addr %s1374, 4
          %s1376 = scalar_lea.vmem [#allocation12], %s1375
          %1378 = dma.done %s1373, 64
        $region92: #{tpu_custom_call.1} parent=87 // pred_fallthru
          _
      $region88: #{tpu_custom_call.1} parent=5 // pred_fallthru
        _
    $region6: #{tpu_custom_call.1} parent=1 // loop_footer
      %s27 = sadd.s32 1, %s23
    $region7: #{tpu_custom_call.1} parent=1 // loop_footer_branch
      %22 = sbr.rel target = $region3
    $region8: #{tpu_custom_call.1} parent=1 // loop_exit
      _
    %1379 = vsyncpa [#allocation5], 1
    %s1380 = scalar_lea.sflag [#allocation5], 1
    %1381 = vsyncpa %s1380, 1
    %1382 = vsyncpa [#allocation8], 1
    %1383 = vsyncpa [#allocation11], 1
    %1384 = vsyncpa [#allocation6], 1
    %s1385 = scalar_lea.sflag [#allocation6], 1
    %1386 = vsyncpa %s1385, 1

</llo_original>
